<compile_context>
chip_gen: v5e
topology: v5e:2x2
jax: 0.10.0
libtpu: 0.0.40
codegen_flags: <defaults>
</compile_context>

<pallas_src>
import functools

import jax
import jax.numpy as jnp
from jax.experimental import pallas as pl
from jax.experimental.pallas import tpu as pltpu


def _dirs_from_flat_index(scal_ref, lin_f, dirs_ref):
    """Shared body: flat pixel index (f32, exact integer < 2^24) -> unit ray dirs.

    scal_ref: SMEM f32[11] = [m00, m01, c0, m10, m11, c1, m20, m21, c2, W, 1/W]
              where c = M @ [0.5, 0.5, 1] folds the half-pixel offset + homogeneous 1.
    lin_f:    VMEM-resident f32[block_rows, 128] flat pixel indices (y*W + x).
    dirs_ref: VMEM f32[3, block_rows, 128] normalized ray directions (planar).
    """
    w = scal_ref[9]
    inv_w = scal_ref[10]

    # Integer division by W on the VPU: reciprocal multiply + one-step correction
    # (the rounded f32 reciprocal can push floor() off by one near exact multiples).
    # Exact because lin, q*W and the remainder are integers < 2^24 (asserted in the
    # wrapper), hence exactly representable in f32.
    q = jnp.floor(lin_f * inv_w)
    r = lin_f - q * w
    neg = r < 0.0
    q = jnp.where(neg, q - 1.0, q)
    r = jnp.where(neg, r + w, r)
    ovf = r >= w
    q = jnp.where(ovf, q + 1.0, q)
    r = jnp.where(ovf, r - w, r)
    x = r  # pixel column (half-pixel offset folded into c)
    y = q  # pixel row

    # d = M @ [x+.5, y+.5, 1]^T — kept on the VPU (scalar*vector FMAs); a padded MXU
    # matmul for a 3x3 would waste >99% of the MXU and add layout shuffles.
    d0 = scal_ref[0] * x + scal_ref[1] * y + scal_ref[2]
    d1 = scal_ref[3] * x + scal_ref[4] * y + scal_ref[5]
    d2 = scal_ref[6] * x + scal_ref[7] * y + scal_ref[8]

    # L2 normalize: rsqrt(max(ss, 1e-24)) == torch F.normalize(eps=1e-12) in behavior
    # (may differ from sqrt+div in the last ~ulp; well inside the 1e-5 tolerance).
    inv = jax.lax.rsqrt(jnp.maximum(d0 * d0 + d1 * d1 + d2 * d2, 1e-24))

    # Each write is a full (block_rows, 128) slab: dense sublanes, unmasked stores.
    dirs_ref[0, :, :] = d0 * inv
    dirs_ref[1, :, :] = d1 * inv
    dirs_ref[2, :, :] = d2 * inv


def _rays_grid_kernel(scal_ref, dirs_ref):
    # Full-image path: no tiled input at all — the flat pixel index is generated
    # in-kernel from the grid position, so the kernel is write-only (12 B/ray).
    block_rows = dirs_ref.shape[1]
    base = pl.program_id(0) * (block_rows * 128)
    row = jax.lax.broadcasted_iota(jnp.int32, (block_rows, 128), 0)
    lane = jax.lax.broadcasted_iota(jnp.int32, (block_rows, 128), 1)
    lin_f = (base + row * 128 + lane).astype(jnp.float32)
    _dirs_from_flat_index(scal_ref, lin_f, dirs_ref)


def _rays_gather_kernel(scal_ref, idx_ref, dirs_ref):
    # Random-subset path: streams the raw flat indices (y*W + x), one int32 per ray,
    # and decodes x/y in-kernel.  No H*W grid materialization, no XLA gather.
    _dirs_from_flat_index(scal_ref, idx_ref[...].astype(jnp.float32), dirs_ref)


def _plan_blocks(rows_needed, block_rows):
    """Balanced block sizing: minimal tail padding, >=2 equal blocks for megacore."""
    max_rows = max(8, (int(block_rows) // 8) * 8)
    num_blocks = pl.cdiv(rows_needed, max_rows)
    if rows_needed >= 16:
        # Guarantee at least 2 balanced blocks so v7x's two TensorCores both get work.
        num_blocks = max(num_blocks, 2)
    block_rows_eff = ((pl.cdiv(rows_needed, num_blocks) + 7) // 8) * 8
    num_blocks = pl.cdiv(rows_needed, block_rows_eff)
    return num_blocks, block_rows_eff


@functools.partial(
    jax.jit,
    static_argnames=("width", "height", "block_rows", "min_pallas_rays",
                     "planar_outputs"))
def create_rays_pallas(K, tf_cam_world, width, height, rand_indices=None,
                       block_rows=1024, min_pallas_rays=1024, planar_outputs=False):
    # Every flat pixel index must be exactly representable in f32 so the in-kernel
    # reciprocal-multiply division by W is exact after a one-step correction.
    assert width * height < (1 << 24), "frame too large for f32 flat-index decode"
    # TODO(synk): frames with >= 2^24 pixels would need a packed (y<<16|x) input variant.

    # ---- tiny 3x3 glue math (done once by XLA) ----
    K_inv = jnp.linalg.inv(K.astype(jnp.float32))
    R_cw = tf_cam_world[:3, :3].astype(jnp.float32)
    t_cw = tf_cam_world[:3, 3].astype(jnp.float32)
    R_wc = R_cw.T                              # tf_world_cam.linear()
    t_wc = -R_cw.T @ t_cw                      # tf_world_cam.translation()
    M = (R_wc @ K_inv).astype(jnp.float32)     # fused K^-1 followed by R_wc
    c = M @ jnp.array([0.5, 0.5, 1.0], jnp.float32)   # fold +0.5 and homogeneous 1
    scal = jnp.concatenate([
        jnp.stack([M[0, 0], M[0, 1], c[0],
                   M[1, 0], M[1, 1], c[1],
                   M[2, 0], M[2, 1], c[2]]),
        jnp.array([float(width), 1.0 / float(width)], jnp.float32),
    ]).astype(jnp.float32)

    n = width * height if rand_indices is None else rand_indices.shape[0]

    def finish(dirs_planar):  # dirs_planar: (3, n)
        if planar_outputs:
            # Bandwidth-friendly layout: origins as a single (3,) vector, dirs planar
            # (3, N).  Skips the (3,N)->(N,3) transpose (a full extra HBM pass) and
            # the 12 B/ray write of a constant broadcast; consumer does the broadcast
            # / transpose lazily if it really needs the torch layout.
            return t_wc, dirs_planar
        ray_origins = jnp.broadcast_to(t_wc.reshape(1, 3), (n, 3))
        return ray_origins, dirs_planar.T

    if n < min_pallas_rays:
        # Tiny problems: pallas_call launch + padding overhead exceeds the work.
        if rand_indices is None:
            idx = jnp.arange(n, dtype=jnp.int32)
        else:
            idx = rand_indices.astype(jnp.int32)
        q = idx // width
        y = q.astype(jnp.float32)
        x = (idx - q * width).astype(jnp.float32)
        d = jnp.stack([scal[0] * x + scal[1] * y + scal[2],
                       scal[3] * x + scal[4] * y + scal[5],
                       scal[6] * x + scal[7] * y + scal[8]], axis=0)     # (3, n)
        d = d * jax.lax.rsqrt(jnp.maximum(jnp.sum(d * d, axis=0, keepdims=True), 1e-24))
        return finish(d)

    # ---- rays laid out as (rows, 128): lane-dense, sublane-dense slabs ----
    rows_needed = pl.cdiv(n, 128)
    num_blocks, block_rows_eff = _plan_blocks(rows_needed, block_rows)
    n_rows_pad = num_blocks * block_rows_eff
    n_pad = n_rows_pad * 128

    out_shape = jax.ShapeDtypeStruct((3, n_rows_pad, 128), jnp.float32)
    out_spec = pl.BlockSpec((3, block_rows_eff, 128), lambda i: (0, i, 0))
    cparams = pltpu.CompilerParams(dimension_semantics=("parallel",))
    # TODO(synk): if v7x profiling shows one TensorCore idle on the "parallel" axis,
    # switch to pltpu.CORE_PARALLEL (or a core_map over create_tensorcore_mesh).

    if rand_indices is None:
        dirs = pl.pallas_call(
            _rays_grid_kernel,
            out_shape=out_shape,
            grid=(num_blocks,),
            in_specs=[pl.BlockSpec(memory_space=pltpu.MemorySpace.SMEM)],  # scal (11,)
            out_specs=out_spec,
            compiler_params=cparams,
        )(scal)
    else:
        idx = rand_indices.astype(jnp.int32)
        # Padded tail decodes to pixel (0, 0): valid math, sliced off below.
        idx2d = jnp.pad(idx, (0, n_pad - n)).reshape(n_rows_pad, 128)
        if 3 <= num_blocks < 8:
            # Short grids hide the input DMA poorly behind double buffering; an extra
            # buffer costs < 1.5 MiB VMEM and removes the exposed latency.
            idx_spec = pl.BlockSpec((block_rows_eff, 128), lambda i: (i, 0),
                                    pipeline_mode=pl.Buffered(3))
        else:
            idx_spec = pl.BlockSpec((block_rows_eff, 128), lambda i: (i, 0))
        dirs = pl.pallas_call(
            _rays_gather_kernel,
            out_shape=out_shape,
            grid=(num_blocks,),
            in_specs=[pl.BlockSpec(memory_space=pltpu.MemorySpace.SMEM), idx_spec],
            out_specs=out_spec,
            compiler_params=cparams,
        )(scal, idx2d)

    return finish(dirs.reshape(3, n_pad)[:, :n])


def create_rays_reference(K, tf_cam_world, width, height, rand_indices=None):
    """Pure-JAX reference mirroring the PyTorch forward."""
    x = jnp.arange(width, dtype=jnp.float32) + 0.5
    y = jnp.arange(height, dtype=jnp.float32) + 0.5
    xx, yy = jnp.meshgrid(x, y)                              # each (H, W)
    pts = jnp.stack([xx.reshape(-1), yy.reshape(-1),
                     jnp.ones((height * width,), jnp.float32)], axis=1)
    sel = pts if rand_indices is None else pts[rand_indices]
    K_inv = jnp.linalg.inv(K.astype(jnp.float32))
    R_cw = tf_cam_world[:3, :3].astype(jnp.float32)
    t_cw = tf_cam_world[:3, 3].astype(jnp.float32)
    R_wc = R_cw.T
    t_wc = (-R_cw.T @ t_cw).reshape(1, 3)
    cam = (K_inv @ sel.T).T
    world = (R_wc @ cam.T).T + t_wc
    d = world - t_wc
    d = d / jnp.maximum(jnp.linalg.norm(d, axis=1, keepdims=True), 1e-12)
    origins = jnp.broadcast_to(t_wc, (sel.shape[0], 3))
    return origins, d


if __name__ == "__main__":
    key = jax.random.PRNGKey(0)
    k1, k2, k3, k4 = jax.random.split(key, 4)

    # Synthetic frame: 256x192 intrinsics, random orthonormal pose.
    width, height = 256, 192
    K = jnp.array([[200.0, 0.0, width / 2.0],
                   [0.0, 200.0, height / 2.0],
                   [0.0, 0.0, 1.0]], dtype=jnp.float32)

    A = jax.random.normal(k1, (3, 3), dtype=jnp.float32)
    Q, _ = jnp.linalg.qr(A)                                  # orthonormal rotation
    t_cam_world = jax.random.normal(k2, (3,), dtype=jnp.float32) * 0.5
    tf_cam_world = jnp.eye(4, dtype=jnp.float32)
    tf_cam_world = tf_cam_world.at[:3, :3].set(Q).at[:3, 3].set(t_cam_world)

    n_full = width * height                                  # 49152 rays
    rand_indices = jax.random.randint(k3, (8192,), 0, n_full, dtype=jnp.int32)
    tiny_indices = jax.random.randint(k4, (256,), 0, n_full, dtype=jnp.int32)

    # 1) Full image grid, torch-compatible (N,3) layout.
    o_full, d_full = create_rays_pallas(K, tf_cam_world, width, height, None)
    # 2) Full image grid, bandwidth-friendly planar layout.
    o_fp, d_fp = create_rays_pallas(K, tf_cam_world, width, height, None,
                                    planar_outputs=True)
    # 3) Random ray subset, torch-compatible layout (2 balanced blocks).
    o_sub, d_sub = create_rays_pallas(K, tf_cam_world, width, height, rand_indices)
    # 4) Random subset with small blocks -> 4 balanced blocks + Buffered(3), planar.
    o_sp, d_sp = create_rays_pallas(K, tf_cam_world, width, height, rand_indices,
                                    block_rows=16, planar_outputs=True)
    # 5) Tiny subset -> pure-XLA fallback path.
    o_tiny, d_tiny = create_rays_pallas(K, tf_cam_world, width, height, tiny_indices)
    jax.block_until_ready((o_full, d_full, o_fp, d_fp, o_sub, d_sub,
                           o_sp, d_sp, o_tiny, d_tiny))

    ro_f, rd_f = create_rays_reference(K, tf_cam_world, width, height, None)
    ro_s, rd_s = create_rays_reference(K, tf_cam_world, width, height, rand_indices)
    ro_t, rd_t = create_rays_reference(K, tf_cam_world, width, height, tiny_indices)

    tol = dict(atol=1e-5, rtol=1e-5)
    assert o_full.shape == (n_full, 3) and d_full.shape == (n_full, 3)
    assert jnp.allclose(o_full, ro_f, **tol) and jnp.allclose(d_full, rd_f, **tol)

    assert o_fp.shape == (3,) and d_fp.shape == (3, n_full)
    assert jnp.allclose(o_fp, ro_f[0], **tol) and jnp.allclose(d_fp, rd_f.T, **tol)

    assert o_sub.shape == (8192, 3) and d_sub.shape == (8192, 3)
    assert jnp.allclose(o_sub, ro_s, **tol) and jnp.allclose(d_sub, rd_s, **tol)

    assert o_sp.shape == (3,) and d_sp.shape == (3, 8192)
    assert jnp.allclose(o_sp, ro_s[0], **tol) and jnp.allclose(d_sp, rd_s.T, **tol)

    assert o_tiny.shape == (256, 3) and d_tiny.shape == (256, 3)
    assert jnp.allclose(o_tiny, ro_t, **tol) and jnp.allclose(d_tiny, rd_t, **tol)

    print("KERNEL_OK")
</pallas_src>

<mosaic_0001>
module attributes {stable_mosaic.version = 11 : i64} {
  func.func @_rays_grid_kernel(%arg0: i32, %arg1: memref<11xf32, #tpu.memory_space<smem>>, %arg2: memref<3x192x128xf32, #tpu.memory_space<vmem>>) attributes {dimension_semantics = [#tpu.dimension_semantics<parallel>], iteration_bounds = array<i64: 2>, scalar_prefetch = 0 : i64, scratch_operands = 0 : i64, tpu.core_type = #tpu.core_type<tc>, window_params = [{transform_indices = @transform_0, window_bounds = array<i64: 11>}, {transform_indices = @transform_1, window_bounds = array<i64: 3, 192, 128>}]} {
    %c24576_i32 = arith.constant 24576 : i32
    %0 = arith.muli %arg0, %c24576_i32 : i32
    %1 = tpu.iota {dimensions = array<i32: 0>} : vector<192x128xi32>
    %2 = tpu.iota {dimensions = array<i32: 1>} : vector<192x128xi32>
    %c128_i32 = arith.constant 128 : i32
    %3 = vector.broadcast %c128_i32 : i32 to vector<192x128xi32>
    %4 = arith.muli %1, %3 : vector<192x128xi32>
    %5 = vector.broadcast %0 : i32 to vector<192x128xi32>
    %6 = arith.addi %5, %4 : vector<192x128xi32>
    %7 = arith.addi %6, %2 : vector<192x128xi32>
    %8 = arith.sitofp %7 : vector<192x128xi32> to vector<192x128xf32>
    %c9 = arith.constant 9 : index
    %9 = memref.load %arg1[%c9] : memref<11xf32, #tpu.memory_space<smem>>
    %c10 = arith.constant 10 : index
    %10 = memref.load %arg1[%c10] : memref<11xf32, #tpu.memory_space<smem>>
    %11 = vector.broadcast %10 : f32 to vector<192x128xf32>
    %12 = arith.mulf %8, %11 : vector<192x128xf32>
    %13 = math.floor %12 : vector<192x128xf32>
    %14 = vector.broadcast %9 : f32 to vector<192x128xf32>
    %15 = arith.mulf %13, %14 : vector<192x128xf32>
    %16 = arith.subf %8, %15 : vector<192x128xf32>
    %cst = arith.constant 0.000000e+00 : f32
    %17 = vector.broadcast %cst : f32 to vector<192x128xf32>
    %18 = arith.cmpf olt, %16, %17 : vector<192x128xf32>
    %cst_0 = arith.constant 1.000000e+00 : f32
    %19 = vector.broadcast %cst_0 : f32 to vector<192x128xf32>
    %20 = arith.subf %13, %19 : vector<192x128xf32>
    %21 = arith.select %18, %20, %13 : vector<192x128xi1>, vector<192x128xf32>
    %22 = vector.broadcast %9 : f32 to vector<192x128xf32>
    %23 = arith.addf %16, %22 : vector<192x128xf32>
    %24 = arith.select %18, %23, %16 : vector<192x128xi1>, vector<192x128xf32>
    %25 = vector.broadcast %9 : f32 to vector<192x128xf32>
    %26 = arith.cmpf oge, %24, %25 : vector<192x128xf32>
    %cst_1 = arith.constant 1.000000e+00 : f32
    %27 = vector.broadcast %cst_1 : f32 to vector<192x128xf32>
    %28 = arith.addf %21, %27 : vector<192x128xf32>
    %29 = arith.select %26, %28, %21 : vector<192x128xi1>, vector<192x128xf32>
    %30 = vector.broadcast %9 : f32 to vector<192x128xf32>
    %31 = arith.subf %24, %30 : vector<192x128xf32>
    %32 = arith.select %26, %31, %24 : vector<192x128xi1>, vector<192x128xf32>
    %c0 = arith.constant 0 : index
    %33 = memref.load %arg1[%c0] : memref<11xf32, #tpu.memory_space<smem>>
    %34 = vector.broadcast %33 : f32 to vector<192x128xf32>
    %35 = arith.mulf %34, %32 : vector<192x128xf32>
    %c1 = arith.constant 1 : index
    %36 = memref.load %arg1[%c1] : memref<11xf32, #tpu.memory_space<smem>>
    %37 = vector.broadcast %36 : f32 to vector<192x128xf32>
    %38 = arith.mulf %37, %29 : vector<192x128xf32>
    %39 = arith.addf %35, %38 : vector<192x128xf32>
    %c2 = arith.constant 2 : index
    %40 = memref.load %arg1[%c2] : memref<11xf32, #tpu.memory_space<smem>>
    %41 = vector.broadcast %40 : f32 to vector<192x128xf32>
    %42 = arith.addf %39, %41 : vector<192x128xf32>
    %c3 = arith.constant 3 : index
    %43 = memref.load %arg1[%c3] : memref<11xf32, #tpu.memory_space<smem>>
    %44 = vector.broadcast %43 : f32 to vector<192x128xf32>
    %45 = arith.mulf %44, %32 : vector<192x128xf32>
    %c4 = arith.constant 4 : index
    %46 = memref.load %arg1[%c4] : memref<11xf32, #tpu.memory_space<smem>>
    %47 = vector.broadcast %46 : f32 to vector<192x128xf32>
    %48 = arith.mulf %47, %29 : vector<192x128xf32>
    %49 = arith.addf %45, %48 : vector<192x128xf32>
    %c5 = arith.constant 5 : index
    %50 = memref.load %arg1[%c5] : memref<11xf32, #tpu.memory_space<smem>>
    %51 = vector.broadcast %50 : f32 to vector<192x128xf32>
    %52 = arith.addf %49, %51 : vector<192x128xf32>
    %c6 = arith.constant 6 : index
    %53 = memref.load %arg1[%c6] : memref<11xf32, #tpu.memory_space<smem>>
    %54 = vector.broadcast %53 : f32 to vector<192x128xf32>
    %55 = arith.mulf %54, %32 : vector<192x128xf32>
    %c7 = arith.constant 7 : index
    %56 = memref.load %arg1[%c7] : memref<11xf32, #tpu.memory_space<smem>>
    %57 = vector.broadcast %56 : f32 to vector<192x128xf32>
    %58 = arith.mulf %57, %29 : vector<192x128xf32>
    %59 = arith.addf %55, %58 : vector<192x128xf32>
    %c8 = arith.constant 8 : index
    %60 = memref.load %arg1[%c8] : memref<11xf32, #tpu.memory_space<smem>>
    %61 = vector.broadcast %60 : f32 to vector<192x128xf32>
    %62 = arith.addf %59, %61 : vector<192x128xf32>
    %63 = arith.mulf %42, %42 : vector<192x128xf32>
    %64 = arith.mulf %52, %52 : vector<192x128xf32>
    %65 = arith.addf %63, %64 : vector<192x128xf32>
    %66 = arith.mulf %62, %62 : vector<192x128xf32>
    %67 = arith.addf %65, %66 : vector<192x128xf32>
    %cst_2 = arith.constant 1.000000e-24 : f32
    %68 = vector.broadcast %cst_2 : f32 to vector<192x128xf32>
    %69 = arith.maximumf %67, %68 : vector<192x128xf32>
    %70 = math.rsqrt %69 : vector<192x128xf32>
    %71 = arith.mulf %42, %70 : vector<192x128xf32>
    %c0_3 = arith.constant 0 : index
    %c0_4 = arith.constant 0 : index
    %c0_5 = arith.constant 0 : index
    %72 = vector.load %arg2[%c0_3, %c0_4, %c0_5] : memref<3x192x128xf32, #tpu.memory_space<vmem>>, vector<1x192x128xf32>
    %73 = vector.shape_cast %72 : vector<1x192x128xf32> to vector<192x128xf32>
    %74 = vector.shape_cast %71 : vector<192x128xf32> to vector<1x192x128xf32>
    tpu.vector_store %arg2[%c0_3, %c0_4, %c0_5], %74 {strides = array<i32>} : memref<3x192x128xf32, #tpu.memory_space<vmem>>, vector<1x192x128xf32>,
    %75 = arith.mulf %52, %70 : vector<192x128xf32>
    %c1_6 = arith.constant 1 : index
    %c0_7 = arith.constant 0 : index
    %c0_8 = arith.constant 0 : index
    %76 = vector.load %arg2[%c1_6, %c0_7, %c0_8] : memref<3x192x128xf32, #tpu.memory_space<vmem>>, vector<1x192x128xf32>
    %77 = vector.shape_cast %76 : vector<1x192x128xf32> to vector<192x128xf32>
    %78 = vector.shape_cast %75 : vector<192x128xf32> to vector<1x192x128xf32>
    tpu.vector_store %arg2[%c1_6, %c0_7, %c0_8], %78 {strides = array<i32>} : memref<3x192x128xf32, #tpu.memory_space<vmem>>, vector<1x192x128xf32>,
    %79 = arith.mulf %62, %70 : vector<192x128xf32>
    %c2_9 = arith.constant 2 : index
    %c0_10 = arith.constant 0 : index
    %c0_11 = arith.constant 0 : index
    %80 = vector.load %arg2[%c2_9, %c0_10, %c0_11] : memref<3x192x128xf32, #tpu.memory_space<vmem>>, vector<1x192x128xf32>
    %81 = vector.shape_cast %80 : vector<1x192x128xf32> to vector<192x128xf32>
    %82 = vector.shape_cast %79 : vector<192x128xf32> to vector<1x192x128xf32>
    tpu.vector_store %arg2[%c2_9, %c0_10, %c0_11], %82 {strides = array<i32>} : memref<3x192x128xf32, #tpu.memory_space<vmem>>, vector<1x192x128xf32>,
    return
  }
  func.func @transform_0(%arg0: i32) -> i32 {
    %c0_i32 = arith.constant 0 : i32
    %c0_i32_0 = arith.constant 0 : i32
    return %c0_i32 : i32
  }
  func.func @transform_1(%arg0: i32) -> (i32, i32, i32) {
    %c0_i32 = arith.constant 0 : i32
    %c0_i32_0 = arith.constant 0 : i32
    %c0_i32_1 = arith.constant 0 : i32
    return %c0_i32, %arg0, %c0_i32_0 : i32, i32, i32
  }
}

</mosaic_0001>

<llo_original>
// kernel: custom-call.11
$region0: #{custom-call.11}
  %s0 = inlined_call_operand.hbm [shape: f32[3,3], index: 0, kind: input, shape index: {}]
  %s1 = inlined_call_operand.vmem [shape: f32[3,3], index: 1, kind: output, shape index: {0}]
  %s2 = inlined_call_operand.hbm [shape: s32[3], index: 2, kind: output, shape index: {1}]
  %s3 = inlined_call_operand.vmem [shape: s32[3], index: 3, kind: output, shape index: {2}]
  %4 = xla_tuple %s1, %s2, %s3
  $region1: #{custom-call.11} parent=0
    #allocation0 [shape = 'u8[4096]{0}', space=vmem, size = 0x1000, scoped, tag = 'operand span for operand 0']
    #allocation1 [shape = 'u8[2048]{0}', space=vmem, size = 0x800, scoped, tag = 'packed  for operand 0']
    #allocation2 [shape = 's32[1]{0}', space=sflag, size = 0x4, scoped, tag = 'scoped memory for custom-call.11']
    #allocation3 [shape = 's32[1]{0}', space=sflag, size = 0x4, scoped, tag = 'scoped memory for custom-call.11']
    #allocation4 [shape = 'u8[4096]{0}', space=vmem, size = 0x1000, scoped, tag = 'operand span for operand 1']
    #allocation5 [shape = 'u8[2048]{0}', space=vmem, size = 0x800, scoped, tag = 'packed  for operand 1']
    #allocation6 [shape = 'u8[4096]{0}', space=vmem, size = 0x1000, scoped, tag = 'operand span for operand 2']
    #allocation7 [shape = 'u8[512]{0}', space=vmem, size = 0x400, scoped, tag = 'packed  for operand 2']
    #allocation8 [shape = 'u8[4096]{0}', space=vmem, size = 0x1000, scoped, tag = 'operand span for operand 3']
    #allocation9 [shape = 'u8[512]{0}', space=vmem, size = 0x400, scoped, tag = 'packed  for operand 3']
    #allocation10 [shape = 's32[3,128]{1,0}', space=vmem, size = 0x1000, scoped, tag = 'scratch for permutations']
    %5 = vsyncpa [#allocation2], 0
    %6 = vsyncpa [#allocation3], 0
    %8 = vsyncadd [#allocation2], 0
    %s10 = sshll.u32 %s0, 4
    %s11 = int_to_ptr.hbm [resolvable:$true] %s10
    %s12 = sshll.u32 [#allocation1], 4
    %s13 = int_to_ptr.vmem [resolvable:$true] %s12
    %15 = dma.hbm_to_vmem [thread:$0]  %s11, 64, %s13, [#allocation2]
    %17 = dma.done [#allocation2], 64
    %s19 = ssub.s32 16, 1
    %v20 = vld [vmem:[#allocation1] sm:%s19]
    %21 = vst [vmem:[#allocation0] sm:%s19] %v20
    %v22 = vld [vmem:[#allocation0] sm:$0xff]
    %23 = vst [vmem:[#allocation4] sm:$0xff] %v22
    %24 = vst [vmem:[#allocation6] sm:$0x1] 0
    %v25 = vlaneseq
    %v26 = vshrl.u32 %v25, 7
    %v27 = vmov %v26
    %29 = vst [vmem:[#allocation10] sm:$0xff] %v27
    loop: start=0, step=1, limit=3
    $region3: #{custom-call.11} parent=1 // loop_pre_header
      _
    $region4: #{custom-call.11} parent=1 // loop_header
      %s31 = sphi 0, %s35
      %p32 = scmp.ge.s32.totalorder %s31, 3
    $region5: #{custom-call.11} parent=1 // loop_header_branch
      %34 = sbr.rel (%p32) target = $region9
    $region6: #{custom-call.11} parent=1 // loop_body
      %v36 = vstv %s31
      %v37 = vlaneseq
      %v38 = vshrl.u32 %v37, 7
      %v39 = vmov %v38
      %v40 = vld [vmem:[#allocation4] sm:$0xff]
      %v41 = vand.u32 2147483647, %v40
      %v43 = vstv %s31
      %vm44 = vcmp.ge.s32.totalorder %v39, %v43
      %vm45 = vcmp.lt.s32.totalorder %v39, 3
      %vm46 = vmand %vm44, %vm45
      %vm47 = vcmp.lt.f32.partialorder -inf, %v41
      %vm48 = vmand %vm46, %vm47
      %v49 = vsel %vm48, %v39, %v36
      %v50 = vsel %vm48, %v41, -inf
      %v51 = vrot.slane %v50, 1
      %v52 = vrot.slane %v49, 1
      %vm53 = vcmp.ge.f32.partialorder %v51, %v50
      %v54 = vsel %vm53, %v51, %v50
      %v55 = vsel %vm53, %v52, %v49
      %v56 = vrot.slane %v51, 1
      %v57 = vrot.slane %v52, 1
      %vm58 = vcmp.ge.f32.partialorder %v56, %v54
      %v59 = vsel %vm58, %v56, %v54
      %v60 = vsel %vm58, %v57, %v55
      %v61 = vrot.slane %v56, 1
      %v62 = vrot.slane %v57, 1
      %vm63 = vcmp.ge.f32.partialorder %v61, %v59
      %v64 = vsel %vm63, %v61, %v59
      %v65 = vsel %vm63, %v62, %v60
      %v66 = vrot.slane %v61, 1
      %v67 = vrot.slane %v62, 1
      %vm68 = vcmp.ge.f32.partialorder %v66, %v64
      %v69 = vsel %vm68, %v66, %v64
      %v70 = vsel %vm68, %v67, %v65
      %v71 = vrot.slane %v66, 1
      %v72 = vrot.slane %v67, 1
      %vm73 = vcmp.ge.f32.partialorder %v71, %v69
      %v74 = vsel %vm73, %v71, %v69
      %v75 = vsel %vm73, %v72, %v70
      %v76 = vrot.slane %v71, 1
      %v77 = vrot.slane %v72, 1
      %vm78 = vcmp.ge.f32.partialorder %v76, %v74
      %v79 = vsel %vm78, %v76, %v74
      %v80 = vsel %vm78, %v77, %v75
      %v81 = vrot.slane %v76, 1
      %v82 = vrot.slane %v77, 1
      %vm83 = vcmp.ge.f32.partialorder %v81, %v79
      %v84 = vsel %vm83, %v81, %v79
      %v85 = vsel %vm83, %v82, %v80
      %s86 = ssub.s32 128, %s31
      %87 = vrot.lane.b32.xlu0 %v85, %s86
      %v88 = vpop.permute.xlu0 %87
      %s89 = vtos %v88
      %v90 = vstv %s31
      %v91 = vlaneseq
      %v92 = vand.u32 %v91, 127
      %vm93 = vcmp.eq.s32.totalorder %v92, %v90
      %v94 = vstv %s89
      %v95 = vld [vmem:[#allocation6] ss:$0 sm:$0xff]
      %v96 = vsel %vm93, %v94, %v95
      %97 = vst [vmem:[#allocation6] sm:$0x1] %v96
      %s98 = scalar_lea.vmem [#allocation4], %s31
      %s99 = scalar_lea.vmem [#allocation4], %s89
      %v100 = vld [vmem:[%s98] ss:$0 sm:$0xff]
      %v101 = vld [vmem:[%s99] ss:$0 sm:$0xff]
      %102 = vst [vmem:[%s99] sm:$0x1] %v100
      %103 = vst [vmem:[%s98] sm:$0x1] %v101
      %s104 = scalar_lea.vmem [#allocation10], %s31
      %s105 = scalar_lea.vmem [#allocation10], %s89
      %v106 = vld [vmem:[%s104] ss:$0 sm:$0xff]
      %v107 = vld [vmem:[%s105] ss:$0 sm:$0xff]
      %108 = vst [vmem:[%s105] sm:$0x1] %v106
      %109 = vst [vmem:[%s104] sm:$0x1] %v107
      %vm110 = vcmp.ne.f32.partialorder %v101, 0.0
      %vm111 = vmand %vm93, %vm110
      %v112 = vsel %vm111, %v101, 1.0
      %v113 = vlaneseq
      %v114 = vand.u32 %v113, 127
      %v115 = vstv %s31
      %vm116 = vcmp.gt.s32.totalorder %v114, %v115
      %v117 = vsel %vm116, %v101, 0.0
      %v118 = vlaneseq
      %v119 = vshrl.u32 %v118, 7
      %v120 = vmov %v119
      %v121 = vld [vmem:[#allocation4] sm:$0xff]
      %v123 = vstv %s31
      %vm124 = vcmp.gt.s32.totalorder %v120, %v123
      %v125 = vsel %vm124, %v112, 1.0
      %v126 = vrcp.pop %v125
      %v127 = vmul.f32 %v125, %v126
      %v128 = vsub.f32 1.0, %v127
      %v129 = vmul.f32 %v126, %v128
      %v130 = vadd.f32 %v126, %v129
      %vm131 = vweird.f32 %v125
      %vm132 = vweird.f32 %v126
      %vm133 = vmor %vm131, %vm132
      %v134 = vsel %vm133, %v126, %v130
      %v135 = vand.u32 2147483647, %v125
      %vm136 = vcmp.eq.f32.partialorder %v135, 8.507059e+37
      %v137 = vand.u32 %v125, 2147483648
      %v138 = vor.u32 1.1754944e-38, %v137
      %v139 = vsel %vm136, %v138, %v134
      %v140 = vmul.f32 %v121, %v139
      %vm141 = vmand %vm124, %vm93
      %v142 = vsel %vm141, %v140, 0.0
      %143 = vadd.xlane.f32.xlu0 %v142
      %v144 = vpop.xlane.xlu0 %143
      %v145 = vmul.f32 %v144, %v117
      %v146 = vsub.f32 %v140, %v145
      %147 = vst [vmem:[#allocation4] sm:$0xff] %v146
    $region7: #{custom-call.11} parent=1 // loop_footer
      %s35 = sadd.s32 1, %s31
    $region8: #{custom-call.11} parent=1 // loop_footer_branch
      %30 = sbr.rel target = $region4
    $region9: #{custom-call.11} parent=1 // loop_exit
      _
    %v148 = vld [vmem:[#allocation10] sm:$0xff]
    %s149 = scalar_lea.vmem [#allocation10], 8
    %s150 = scalar_lea.vmem [#allocation10], 16
    %s151 = scalar_lea.vmem [#allocation10], 24
    %s152 = scalar_lea.vmem [#allocation10], 32
    %s153 = scalar_lea.vmem [#allocation10], 40
    %s154 = scalar_lea.vmem [#allocation10], 48
    %s155 = scalar_lea.vmem [#allocation10], 56
    %s156 = scalar_lea.vmem [#allocation10], 64
    %s157 = scalar_lea.vmem [#allocation10], 72
    %s158 = scalar_lea.vmem [#allocation10], 80
    %s159 = scalar_lea.vmem [#allocation10], 88
    %s160 = scalar_lea.vmem [#allocation10], 96
    %s161 = scalar_lea.vmem [#allocation10], 104
    %s162 = scalar_lea.vmem [#allocation10], 112
    %s163 = scalar_lea.vmem [#allocation10], 120
    %164 = vxpose.xlu0.b32.start [1/16] %v148, 128
    %165 = vxpose.xlu0.b32.cont [2/16] 0, 128
    %166 = vxpose.xlu0.b32.cont [3/16] 0, 128
    %167 = vxpose.xlu0.b32.cont [4/16] 0, 128
    %168 = vxpose.xlu0.b32.cont [5/16] 0, 128
    %169 = vxpose.xlu0.b32.cont [6/16] 0, 128
    %170 = vxpose.xlu0.b32.cont [7/16] 0, 128
    %171 = vxpose.xlu0.b32.cont [8/16] 0, 128
    %172 = vxpose.xlu0.b32.cont [9/16] 0, 128
    %173 = vxpose.xlu0.b32.cont [10/16] 0, 128
    %174 = vxpose.xlu0.b32.cont [11/16] 0, 128
    %175 = vxpose.xlu0.b32.cont [12/16] 0, 128
    %176 = vxpose.xlu0.b32.cont [13/16] 0, 128
    %177 = vxpose.xlu0.b32.cont [14/16] 0, 128
    %178 = vxpose.xlu0.b32.cont [15/16] 0, 128
    %179 = vxpose.xlu0.b32.end [16/16] 0, 128
    %v180 = vpop.trf.xlu0
    %v181 = vpop.trf.xlu0
    %v182 = vpop.trf.xlu0
    %v183 = vpop.trf.xlu0
    %v184 = vpop.trf.xlu0
    %v185 = vpop.trf.xlu0
    %v186 = vpop.trf.xlu0
    %v187 = vpop.trf.xlu0
    %v188 = vpop.trf.xlu0
    %v189 = vpop.trf.xlu0
    %v190 = vpop.trf.xlu0
    %v191 = vpop.trf.xlu0
    %v192 = vpop.trf.xlu0
    %v193 = vpop.trf.xlu0
    %v194 = vpop.trf.xlu0
    %v195 = vpop.trf.xlu0
    %196 = vst [vmem:[#allocation8] sm:$0x1] %v180
    %s198 = ssub.s32 16, 1
    %v199 = vld [vmem:[#allocation4] sm:%s198]
    %s201 = ssub.s32 16, 1
    %202 = vst [vmem:[#allocation5] sm:%s201] %v199
    %s204 = ssub.s32 2, 1
    %v205 = vld [vmem:[#allocation6] sm:%s204]
    %s207 = ssub.s32 2, 1
    %208 = vst [vmem:[#allocation7] sm:%s207] %v205
    %s210 = ssub.s32 2, 1
    %v211 = vld [vmem:[#allocation8] sm:%s210]
    %s213 = ssub.s32 2, 1
    %214 = vst [vmem:[#allocation9] sm:%s213] %v211
    // Predicated region
    $region10: #{custom-call.11} parent=1 // pred_check
      _
    $region11: #{custom-call.11} parent=1 // pred_check_branch
      %216 = sbr.rel (0) target = $region13
    $region12: #{custom-call.11} parent=1 // pred_region
      %p218 = scmp.gt.s32.totalorder 0, 0
      // Predicated region
      $region14: #{custom-call.11} parent=12 // pred_check
        %p219 = pneg %p218
      $region15: #{custom-call.11} parent=12 // pred_check_branch
        %221 = sbr.rel (%p219) target = $region17
      $region16: #{custom-call.11} parent=12 // pred_region
        %s222 = ssub.s32 0, 1
        %s223 = smul.u32 %s222, 8
        %s224 = scalar_lea.vmem [#allocation5], %s223
        %v225 = vld [vmem:[#allocation5] sm:$0xff]
        // While loop
        $region18: #{custom-call.11} parent=16 // loop_pre_header
          _
        $region19: #{custom-call.11} parent=16 // loop_header
          %s226 = sphi [#allocation5], %s248
          %s227 = sphi %s1, %s249
          %v228 = vphi %v225, %v250
          %s229 = ssub.s32 %s224, 64
          %p230 = scmp.gt.s32.totalorder %s226, %s229
        $region20: #{custom-call.11} parent=16 // loop_header_branch
          %232 = sbr.rel (%p230) target = $region24
        $region21: #{custom-call.11} parent=16 // loop_body
          %233 = vst [vmem:[%s227] sm:$0xff] %v228
          %v234 = vld [vmem:[%s226 + $0x8] sm:$0xff]
          %235 = vst [vmem:[%s227 + $0x8] sm:$0xff] %v234
          %v236 = vld [vmem:[%s226 + $0x10] sm:$0xff]
          %237 = vst [vmem:[%s227 + $0x10] sm:$0xff] %v236
          %v238 = vld [vmem:[%s226 + $0x18] sm:$0xff]
          %239 = vst [vmem:[%s227 + $0x18] sm:$0xff] %v238
          %v240 = vld [vmem:[%s226 + $0x20] sm:$0xff]
          %241 = vst [vmem:[%s227 + $0x20] sm:$0xff] %v240
          %v242 = vld [vmem:[%s226 + $0x28] sm:$0xff]
          %243 = vst [vmem:[%s227 + $0x28] sm:$0xff] %v242
          %v244 = vld [vmem:[%s226 + $0x30] sm:$0xff]
          %245 = vst [vmem:[%s227 + $0x30] sm:$0xff] %v244
          %v246 = vld [vmem:[%s226 + $0x38] sm:$0xff]
          %247 = vst [vmem:[%s227 + $0x38] sm:$0xff] %v246
        $region22: #{custom-call.11} parent=16 // loop_footer
          %s248 = scalar_lea.vmem %s226, 64
          %s249 = scalar_lea.vmem %s227, 64
          %v250 = vld [vmem:[%s226 + $0x40] sm:$0xff]
        $region23: #{custom-call.11} parent=16 // loop_footer_branch
          %251 = sbr.rel target = $region19
        $region24: #{custom-call.11} parent=16 // loop_exit
          _
        // While loop
        $region25: #{custom-call.11} parent=16 // loop_pre_header
          _
        $region26: #{custom-call.11} parent=16 // loop_header
          %s252 = sphi %s226, %s260
          %s253 = sphi %s227, %s261
          %v254 = vphi %v228, %v254
          %p255 = scmp.gt.s32.totalorder %s252, %s224
        $region27: #{custom-call.11} parent=16 // loop_header_branch
          %257 = sbr.rel (%p255) target = $region31
        $region28: #{custom-call.11} parent=16 // loop_body
          %v258 = vld [vmem:[%s252] sm:$0xff]
          %259 = vst [vmem:[%s253] sm:$0xff] %v258
        $region29: #{custom-call.11} parent=16 // loop_footer
          %s260 = scalar_lea.vmem %s252, 8
          %s261 = scalar_lea.vmem %s253, 8
        $region30: #{custom-call.11} parent=16 // loop_footer_branch
          %262 = sbr.rel target = $region26
        $region31: #{custom-call.11} parent=16 // loop_exit
          _
      $region17: #{custom-call.11} parent=12 // pred_fallthru
        _
      %s264 = ssub.s32 16, 1
      %s265 = smul.u32 0, 8
      %s266 = scalar_lea.vmem %s1, %s265
      %s267 = smul.u32 0, 8
      %s268 = scalar_lea.vmem [#allocation5], %s267
      %v269 = vld [vmem:[%s268] sm:%s264]
      %270 = vst [vmem:[%s266] sm:%s264] %v269
    $region13: #{custom-call.11} parent=1 // pred_fallthru
      _
    // Predicated region
    $region32: #{custom-call.11} parent=1 // pred_check
      _
    $region33: #{custom-call.11} parent=1 // pred_check_branch
      %272 = sbr.rel (0) target = $region35
    $region34: #{custom-call.11} parent=1 // pred_region
      %274 = vsyncadd [#allocation3], 0
      %s276 = sshll.u32 [#allocation7], 4
      %s277 = int_to_ptr.vmem [resolvable:$true] %s276
      %s278 = sshll.u32 %s2, 4
      %s279 = int_to_ptr.hbm [resolvable:$true] %s278
      %281 = dma.vmem_to_hbm [thread:$0]  %s277, 16, %s279, [#allocation3]
    $region35: #{custom-call.11} parent=1 // pred_fallthru
      _
    // Predicated region
    $region36: #{custom-call.11} parent=1 // pred_check
      _
    $region37: #{custom-call.11} parent=1 // pred_check_branch
      %283 = sbr.rel (0) target = $region39
    $region38: #{custom-call.11} parent=1 // pred_region
      // Predicated region
      $region40: #{custom-call.11} parent=38 // pred_check
        _
      $region41: #{custom-call.11} parent=38 // pred_check_branch
        %285 = sbr.rel (0) target = $region43
      $region42: #{custom-call.11} parent=38 // pred_region
        %p287 = scmp.gt.s32.totalorder 0, 0
        // Predicated region
        $region44: #{custom-call.11} parent=42 // pred_check
          %p288 = pneg %p287
        $region45: #{custom-call.11} parent=42 // pred_check_branch
          %290 = sbr.rel (%p288) target = $region47
        $region46: #{custom-call.11} parent=42 // pred_region
          %s291 = ssub.s32 0, 1
          %s292 = smul.u32 %s291, 8
          %s293 = scalar_lea.vmem [#allocation9], %s292
          %v294 = vld [vmem:[#allocation9] sm:$0xff]
          // While loop
          $region48: #{custom-call.11} parent=46 // loop_pre_header
            _
          $region49: #{custom-call.11} parent=46 // loop_header
            %s295 = sphi [#allocation9], %s317
            %s296 = sphi %s3, %s318
            %v297 = vphi %v294, %v319
            %s298 = ssub.s32 %s293, 64
            %p299 = scmp.gt.s32.totalorder %s295, %s298
          $region50: #{custom-call.11} parent=46 // loop_header_branch
            %301 = sbr.rel (%p299) target = $region54
          $region51: #{custom-call.11} parent=46 // loop_body
            %302 = vst [vmem:[%s296] sm:$0xff] %v297
            %v303 = vld [vmem:[%s295 + $0x8] sm:$0xff]
            %304 = vst [vmem:[%s296 + $0x8] sm:$0xff] %v303
            %v305 = vld [vmem:[%s295 + $0x10] sm:$0xff]
            %306 = vst [vmem:[%s296 + $0x10] sm:$0xff] %v305
            %v307 = vld [vmem:[%s295 + $0x18] sm:$0xff]
            %308 = vst [vmem:[%s296 + $0x18] sm:$0xff] %v307
            %v309 = vld [vmem:[%s295 + $0x20] sm:$0xff]
            %310 = vst [vmem:[%s296 + $0x20] sm:$0xff] %v309
            %v311 = vld [vmem:[%s295 + $0x28] sm:$0xff]
            %312 = vst [vmem:[%s296 + $0x28] sm:$0xff] %v311
            %v313 = vld [vmem:[%s295 + $0x30] sm:$0xff]
            %314 = vst [vmem:[%s296 + $0x30] sm:$0xff] %v313
            %v315 = vld [vmem:[%s295 + $0x38] sm:$0xff]
            %316 = vst [vmem:[%s296 + $0x38] sm:$0xff] %v315
          $region52: #{custom-call.11} parent=46 // loop_footer
            %s317 = scalar_lea.vmem %s295, 64
            %s318 = scalar_lea.vmem %s296, 64
            %v319 = vld [vmem:[%s295 + $0x40] sm:$0xff]
          $region53: #{custom-call.11} parent=46 // loop_footer_branch
            %320 = sbr.rel target = $region49
          $region54: #{custom-call.11} parent=46 // loop_exit
            _
          // While loop
          $region55: #{custom-call.11} parent=46 // loop_pre_header
            _
          $region56: #{custom-call.11} parent=46 // loop_header
            %s321 = sphi %s295, %s329
            %s322 = sphi %s296, %s330
            %v323 = vphi %v297, %v323
            %p324 = scmp.gt.s32.totalorder %s321, %s293
          $region57: #{custom-call.11} parent=46 // loop_header_branch
            %326 = sbr.rel (%p324) target = $region61
          $region58: #{custom-call.11} parent=46 // loop_body
            %v327 = vld [vmem:[%s321] sm:$0xff]
            %328 = vst [vmem:[%s322] sm:$0xff] %v327
          $region59: #{custom-call.11} parent=46 // loop_footer
            %s329 = scalar_lea.vmem %s321, 8
            %s330 = scalar_lea.vmem %s322, 8
          $region60: #{custom-call.11} parent=46 // loop_footer_branch
            %331 = sbr.rel target = $region56
          $region61: #{custom-call.11} parent=46 // loop_exit
            _
        $region47: #{custom-call.11} parent=42 // pred_fallthru
          _
        %s333 = ssub.s32 2, 1
        %s334 = smul.u32 0, 8
        %s335 = scalar_lea.vmem %s3, %s334
        %s336 = smul.u32 0, 8
        %s337 = scalar_lea.vmem [#allocation9], %s336
        %v338 = vld [vmem:[%s337] sm:%s333]
        %339 = vst [vmem:[%s335] sm:%s333] %v338
      $region43: #{custom-call.11} parent=38 // pred_fallthru
        _
    $region39: #{custom-call.11} parent=1 // pred_fallthru
      _
    // Predicated region
    $region62: #{custom-call.11} parent=1 // pred_check
      _
    $region63: #{custom-call.11} parent=1 // pred_check_branch
      %341 = sbr.rel (0) target = $region65
    $region64: #{custom-call.11} parent=1 // pred_region
      %343 = dma.done [#allocation3], 16
    $region65: #{custom-call.11} parent=1 // pred_fallthru
      _
    // Predicated region
    $region66: #{custom-call.11} parent=1 // pred_check
      _
    $region67: #{custom-call.11} parent=1 // pred_check_branch
      %345 = sbr.rel (0) target = $region69
    $region68: #{custom-call.11} parent=1 // pred_region
      _
    $region69: #{custom-call.11} parent=1 // pred_fallthru
      _
    %346 = vsyncpa [#allocation2], 1
    %347 = vsyncpa [#allocation3], 1

// kernel: custom-call.12
$region0: #{custom-call.12}
  %s0 = inlined_call_operand.vmem [shape: f32[1,3,3], index: 0, kind: input, shape index: {}]
  %s1 = inlined_call_operand.vmem [shape: f32[1,3,3], index: 1, kind: output, shape index: {}]
  $region1: #{custom-call.12} parent=0
    #allocation0 [shape = 'u8[4096]{0}', space=vmem, size = 0x1000, scoped, tag = 'operand span for operand 0']
    #allocation1 [shape = 'u8[2048]{0}', space=vmem, size = 0x800, scoped, tag = 'packed  for operand 0']
    #allocation2 [shape = 'u8[4096]{0}', space=vmem, size = 0x1000, scoped, tag = 'operand span for operand 1']
    #allocation3 [shape = 'u8[2048]{0}', space=vmem, size = 0x800, scoped, tag = 'packed  for operand 1']
    #allocation4 [shape = 'f32[3,3]{1,0}', space=vmem, size = 0x1000, scoped, tag = 'rescaled input a']
    // Predicated region
    $region2: #{custom-call.12} parent=1 // pred_check
      _
    $region3: #{custom-call.12} parent=1 // pred_check_branch
      %3 = sbr.rel (0) target = $region5
    $region4: #{custom-call.12} parent=1 // pred_region
      // Predicated region
      $region6: #{custom-call.12} parent=4 // pred_check
        _
      $region7: #{custom-call.12} parent=4 // pred_check_branch
        %5 = sbr.rel target = $region9
      $region8: #{custom-call.12} parent=4 // pred_region
        // Predicated region
        $region21: #{custom-call.12} parent=8 // pred_check
          _
        $region22: #{custom-call.12} parent=8 // pred_check_branch
          %21 = sbr.rel (0) target = $region24
        $region23: #{custom-call.12} parent=8 // pred_region
          %s23 = ssub.s32 16, 1
          loop: start=0, step=1, limit=1
          $region25: #{custom-call.12} parent=23 // loop_pre_header
            _
          $region26: #{custom-call.12} parent=23 // loop_header
            %s25 = sphi 0, %s29
            %p26 = scmp.ge.s32.totalorder %s25, 1
            %s30 = sphi %s0, %s0
            %s31 = sphi [#allocation1], [#allocation1]
          $region27: #{custom-call.12} parent=23 // loop_header_branch
            %28 = sbr.rel (%p26) target = $region31
          $region28: #{custom-call.12} parent=23 // loop_body
            %v32 = vld [vmem:[%s30] sm:%s23]
            %33 = vst [vmem:[%s31] sm:%s23] %v32
          $region29: #{custom-call.12} parent=23 // loop_footer
            %s29 = sadd.s32 1, %s25
          $region30: #{custom-call.12} parent=23 // loop_footer_branch
            %24 = sbr.rel target = $region26
          $region31: #{custom-call.12} parent=23 // loop_exit
            _
        $region24: #{custom-call.12} parent=8 // pred_fallthru
          _
      $region9: #{custom-call.12} parent=4 // pred_fallthru
        _
      // Predicated region
      $region10: #{custom-call.12} parent=4 // pred_check
        _
      $region11: #{custom-call.12} parent=4 // pred_check_branch
        %7 = sbr.rel (0) target = $region13
      $region12: #{custom-call.12} parent=4 // pred_region
        %s9 = ssub.s32 16, 1
        loop: start=0, step=1, limit=1
        $region14: #{custom-call.12} parent=12 // loop_pre_header
          _
        $region15: #{custom-call.12} parent=12 // loop_header
          %s11 = sphi 0, %s15
          %p12 = scmp.ge.s32.totalorder %s11, 1
          %s16 = sphi %s0, %s0
          %s17 = sphi [#allocation1], [#allocation1]
        $region16: #{custom-call.12} parent=12 // loop_header_branch
          %14 = sbr.rel (%p12) target = $region20
        $region17: #{custom-call.12} parent=12 // loop_body
          %v18 = vld [vmem:[%s16] sm:%s9]
          %19 = vst [vmem:[%s17] sm:%s9] %v18
        $region18: #{custom-call.12} parent=12 // loop_footer
          %s15 = sadd.s32 1, %s11
        $region19: #{custom-call.12} parent=12 // loop_footer_branch
          %10 = sbr.rel target = $region15
        $region20: #{custom-call.12} parent=12 // loop_exit
          _
      $region13: #{custom-call.12} parent=4 // pred_fallthru
        _
    $region5: #{custom-call.12} parent=1 // pred_fallthru
      _
    %34 = vnop
    %s36 = ssub.s32 16, 1
    %v37 = vld [vmem:[#allocation1] sm:%s36]
    %38 = vst [vmem:[#allocation0] sm:%s36] %v37
    %v39 = vlaneseq
    %v40 = vand.u32 %v39, 127
    %vm41 = vcmp.lt.s32.totalorder %v40, 3
    %v42 = vlaneseq
    %v43 = vshrl.u32 %v42, 7
    %vm45 = vcmp.eq.s32.totalorder %v43, %v40
    %v46 = vld [vmem:[#allocation0] sm:$0xff]
    %v47 = vsel %vm45, %v46, 0.0
    %48 = vadd.xlane.f32.xlu0 %v47
    %v49 = vpop.xlane.xlu0 %48
    %vm50 = vcmp.le.s32.totalorder %v43, %v40
    %vm51 = vmand %vm50, %vm41
    %v52 = vsel %vm51, %v46, 0.0
    %v53 = vrcp.pop %v49
    %v54 = vmul.f32 %v49, %v53
    %v55 = vsub.f32 1.0, %v54
    %v56 = vmul.f32 %v53, %v55
    %v57 = vadd.f32 %v53, %v56
    %vm58 = vweird.f32 %v49
    %vm59 = vweird.f32 %v53
    %vm60 = vmor %vm58, %vm59
    %v61 = vsel %vm60, %v53, %v57
    %v62 = vand.u32 2147483647, %v49
    %vm63 = vcmp.eq.f32.partialorder %v62, 8.507059e+37
    %v64 = vand.u32 %v49, 2147483648
    %v65 = vor.u32 1.1754944e-38, %v64
    %v66 = vsel %vm63, %v65, %v61
    %v67 = vmul.f32 %v52, %v66
    %68 = vst [vmem:[#allocation4] sm:$0xff] %v67
    %v69 = vlaneseq
    %v70 = vand.u32 %v69, 127
    %v71 = vlaneseq
    %v72 = vshrl.u32 %v71, 7
    %vm74 = vcmp.eq.s32.totalorder %v70, %v72
    %v75 = vlaneseq
    %v76 = vand.u32 %v75, 127
    %vm77 = vcmp.eq.s32.totalorder %v76, 2
    %v78 = vsel %vm77, 1.0, -1.0
    %v79 = vsel %vm74, %v78, 0.0
    %s80 = scalar_lea.vmem [#allocation4], 1
    %v81 = vld [vmem:[%s80] ss:$0 sm:$0xff]
    %v82 = vxor.u32 %v81, 2147483648
    %v83 = vlaneseq
    %v84 = vand.u32 %v83, 127
    %vm85 = vcmp.eq.s32.totalorder %v84, 1
    %v86 = vmul.f32 %v82, %v79
    %87 = vadd.xlane.f32.xlu0 %v86
    %v88 = vpop.xlane.xlu0 %87
    %v89 = vsel %vm85, %v88, %v79
    %v90 = vld [vmem:[#allocation4] ss:$0 sm:$0xff]
    %v91 = vxor.u32 %v90, 2147483648
    %v92 = vlaneseq
    %v93 = vand.u32 %v92, 127
    %vm94 = vcmp.eq.s32.totalorder %v93, 0
    %v95 = vmul.f32 %v91, %v89
    %96 = vadd.xlane.f32.xlu0 %v95
    %v97 = vpop.xlane.xlu0 %96
    %v98 = vsel %vm94, %v97, %v89
    %v99 = vrcp.pop %v49
    %v100 = vmul.f32 %v49, %v99
    %v101 = vsub.f32 1.0, %v100
    %v102 = vmul.f32 %v99, %v101
    %v103 = vadd.f32 %v99, %v102
    %vm104 = vweird.f32 %v49
    %vm105 = vweird.f32 %v99
    %vm106 = vmor %vm104, %vm105
    %v107 = vsel %vm106, %v99, %v103
    %v108 = vand.u32 2147483647, %v49
    %vm109 = vcmp.eq.f32.partialorder %v108, 8.507059e+37
    %v110 = vand.u32 %v49, 2147483648
    %v111 = vor.u32 1.1754944e-38, %v110
    %v112 = vsel %vm109, %v111, %v107
    %v113 = vmul.f32 %v98, %v112
    %vm114 = vweird.f32 %v49
    %v115 = vsel %vm114, %v98, %v113
    %116 = vst [vmem:[#allocation2] sm:$0xff] %v115
    %s118 = ssub.s32 16, 1
    %v119 = vld [vmem:[#allocation2] sm:%s118]
    %s121 = ssub.s32 16, 1
    %122 = vst [vmem:[#allocation3] sm:%s121] %v119
    // Predicated region
    $region32: #{custom-call.12} parent=1 // pred_check
      _
    $region33: #{custom-call.12} parent=1 // pred_check_branch
      %124 = sbr.rel (0) target = $region35
    $region34: #{custom-call.12} parent=1 // pred_region
      // Predicated region
      $region36: #{custom-call.12} parent=34 // pred_check
        _
      $region37: #{custom-call.12} parent=34 // pred_check_branch
        %126 = sbr.rel target = $region39
      $region38: #{custom-call.12} parent=34 // pred_region
        // Predicated region
        $region51: #{custom-call.12} parent=38 // pred_check
          _
        $region52: #{custom-call.12} parent=38 // pred_check_branch
          %142 = sbr.rel (0) target = $region54
        $region53: #{custom-call.12} parent=38 // pred_region
          %s144 = ssub.s32 16, 1
          loop: start=0, step=1, limit=1
          $region55: #{custom-call.12} parent=53 // loop_pre_header
            _
          $region56: #{custom-call.12} parent=53 // loop_header
            %s146 = sphi 0, %s150
            %p147 = scmp.ge.s32.totalorder %s146, 1
            %s151 = sphi [#allocation3], [#allocation3]
            %s152 = sphi %s1, %s1
          $region57: #{custom-call.12} parent=53 // loop_header_branch
            %149 = sbr.rel (%p147) target = $region61
          $region58: #{custom-call.12} parent=53 // loop_body
            %v153 = vld [vmem:[%s151] sm:%s144]
            %154 = vst [vmem:[%s152] sm:%s144] %v153
          $region59: #{custom-call.12} parent=53 // loop_footer
            %s150 = sadd.s32 1, %s146
          $region60: #{custom-call.12} parent=53 // loop_footer_branch
            %145 = sbr.rel target = $region56
          $region61: #{custom-call.12} parent=53 // loop_exit
            _
        $region54: #{custom-call.12} parent=38 // pred_fallthru
          _
      $region39: #{custom-call.12} parent=34 // pred_fallthru
        _
      // Predicated region
      $region40: #{custom-call.12} parent=34 // pred_check
        _
      $region41: #{custom-call.12} parent=34 // pred_check_branch
        %128 = sbr.rel (0) target = $region43
      $region42: #{custom-call.12} parent=34 // pred_region
        %s130 = ssub.s32 16, 1
        loop: start=0, step=1, limit=1
        $region44: #{custom-call.12} parent=42 // loop_pre_header
          _
        $region45: #{custom-call.12} parent=42 // loop_header
          %s132 = sphi 0, %s136
          %p133 = scmp.ge.s32.totalorder %s132, 1
          %s137 = sphi [#allocation3], [#allocation3]
          %s138 = sphi %s1, %s1
        $region46: #{custom-call.12} parent=42 // loop_header_branch
          %135 = sbr.rel (%p133) target = $region50
        $region47: #{custom-call.12} parent=42 // loop_body
          %v139 = vld [vmem:[%s137] sm:%s130]
          %140 = vst [vmem:[%s138] sm:%s130] %v139
        $region48: #{custom-call.12} parent=42 // loop_footer
          %s136 = sadd.s32 1, %s132
        $region49: #{custom-call.12} parent=42 // loop_footer_branch
          %131 = sbr.rel target = $region45
        $region50: #{custom-call.12} parent=42 // loop_exit
          _
      $region43: #{custom-call.12} parent=34 // pred_fallthru
        _
    $region35: #{custom-call.12} parent=1 // pred_fallthru
      _
    %155 = vnop

// kernel: custom-call.13
$region0: #{custom-call.13}
  %s0 = inlined_call_operand.vmem [shape: f32[1,3,3], index: 0, kind: input, shape index: {}]
  %s1 = inlined_call_operand.vmem [shape: f32[1,3,3], index: 1, kind: output, shape index: {}]
  $region1: #{custom-call.13} parent=0
    #allocation0 [shape = 'u8[4096]{0}', space=vmem, size = 0x1000, scoped, tag = 'operand span for operand 0']
    #allocation1 [shape = 'u8[2048]{0}', space=vmem, size = 0x800, scoped, tag = 'packed  for operand 0']
    #allocation2 [shape = 'u8[4096]{0}', space=vmem, size = 0x1000, scoped, tag = 'operand span for operand 1']
    #allocation3 [shape = 'u8[2048]{0}', space=vmem, size = 0x800, scoped, tag = 'packed  for operand 1']
    #allocation4 [shape = 'f32[3,3]{1,0}', space=vmem, size = 0x1000, scoped, tag = 'rescaled input a']
    // Predicated region
    $region2: #{custom-call.13} parent=1 // pred_check
      _
    $region3: #{custom-call.13} parent=1 // pred_check_branch
      %3 = sbr.rel (0) target = $region5
    $region4: #{custom-call.13} parent=1 // pred_region
      // Predicated region
      $region6: #{custom-call.13} parent=4 // pred_check
        _
      $region7: #{custom-call.13} parent=4 // pred_check_branch
        %5 = sbr.rel target = $region9
      $region8: #{custom-call.13} parent=4 // pred_region
        // Predicated region
        $region21: #{custom-call.13} parent=8 // pred_check
          _
        $region22: #{custom-call.13} parent=8 // pred_check_branch
          %21 = sbr.rel (0) target = $region24
        $region23: #{custom-call.13} parent=8 // pred_region
          %s23 = ssub.s32 16, 1
          loop: start=0, step=1, limit=1
          $region25: #{custom-call.13} parent=23 // loop_pre_header
            _
          $region26: #{custom-call.13} parent=23 // loop_header
            %s25 = sphi 0, %s29
            %p26 = scmp.ge.s32.totalorder %s25, 1
            %s30 = sphi %s0, %s0
            %s31 = sphi [#allocation1], [#allocation1]
          $region27: #{custom-call.13} parent=23 // loop_header_branch
            %28 = sbr.rel (%p26) target = $region31
          $region28: #{custom-call.13} parent=23 // loop_body
            %v32 = vld [vmem:[%s30] sm:%s23]
            %33 = vst [vmem:[%s31] sm:%s23] %v32
          $region29: #{custom-call.13} parent=23 // loop_footer
            %s29 = sadd.s32 1, %s25
          $region30: #{custom-call.13} parent=23 // loop_footer_branch
            %24 = sbr.rel target = $region26
          $region31: #{custom-call.13} parent=23 // loop_exit
            _
        $region24: #{custom-call.13} parent=8 // pred_fallthru
          _
      $region9: #{custom-call.13} parent=4 // pred_fallthru
        _
      // Predicated region
      $region10: #{custom-call.13} parent=4 // pred_check
        _
      $region11: #{custom-call.13} parent=4 // pred_check_branch
        %7 = sbr.rel (0) target = $region13
      $region12: #{custom-call.13} parent=4 // pred_region
        %s9 = ssub.s32 16, 1
        loop: start=0, step=1, limit=1
        $region14: #{custom-call.13} parent=12 // loop_pre_header
          _
        $region15: #{custom-call.13} parent=12 // loop_header
          %s11 = sphi 0, %s15
          %p12 = scmp.ge.s32.totalorder %s11, 1
          %s16 = sphi %s0, %s0
          %s17 = sphi [#allocation1], [#allocation1]
        $region16: #{custom-call.13} parent=12 // loop_header_branch
          %14 = sbr.rel (%p12) target = $region20
        $region17: #{custom-call.13} parent=12 // loop_body
          %v18 = vld [vmem:[%s16] sm:%s9]
          %19 = vst [vmem:[%s17] sm:%s9] %v18
        $region18: #{custom-call.13} parent=12 // loop_footer
          %s15 = sadd.s32 1, %s11
        $region19: #{custom-call.13} parent=12 // loop_footer_branch
          %10 = sbr.rel target = $region15
        $region20: #{custom-call.13} parent=12 // loop_exit
          _
      $region13: #{custom-call.13} parent=4 // pred_fallthru
        _
    $region5: #{custom-call.13} parent=1 // pred_fallthru
      _
    %34 = vnop
    %s36 = ssub.s32 16, 1
    %v37 = vld [vmem:[#allocation1] sm:%s36]
    %38 = vst [vmem:[#allocation0] sm:%s36] %v37
    %v39 = vlaneseq
    %v40 = vand.u32 %v39, 127
    %vm41 = vcmp.lt.s32.totalorder %v40, 3
    %v42 = vlaneseq
    %v43 = vshrl.u32 %v42, 7
    %vm45 = vcmp.eq.s32.totalorder %v43, %v40
    %v46 = vld [vmem:[#allocation0] sm:$0xff]
    %v47 = vsel %vm45, %v46, 0.0
    %48 = vadd.xlane.f32.xlu0 %v47
    %v49 = vpop.xlane.xlu0 %48
    %vm50 = vcmp.ge.s32.totalorder %v43, %v40
    %vm51 = vmand %vm50, %vm41
    %v52 = vsel %vm51, %v46, 0.0
    %v53 = vrcp.pop %v49
    %v54 = vmul.f32 %v49, %v53
    %v55 = vsub.f32 1.0, %v54
    %v56 = vmul.f32 %v53, %v55
    %v57 = vadd.f32 %v53, %v56
    %vm58 = vweird.f32 %v49
    %vm59 = vweird.f32 %v53
    %vm60 = vmor %vm58, %vm59
    %v61 = vsel %vm60, %v53, %v57
    %v62 = vand.u32 2147483647, %v49
    %vm63 = vcmp.eq.f32.partialorder %v62, 8.507059e+37
    %v64 = vand.u32 %v49, 2147483648
    %v65 = vor.u32 1.1754944e-38, %v64
    %v66 = vsel %vm63, %v65, %v61
    %v67 = vmul.f32 %v52, %v66
    %68 = vst [vmem:[#allocation4] sm:$0xff] %v67
    %v69 = vlaneseq
    %v70 = vand.u32 %v69, 127
    %v71 = vlaneseq
    %v72 = vshrl.u32 %v71, 7
    %vm74 = vcmp.eq.s32.totalorder %v70, %v72
    %v75 = vlaneseq
    %v76 = vand.u32 %v75, 127
    %vm77 = vcmp.eq.s32.totalorder %v76, 0
    %v78 = vsel %vm77, 1.0, -1.0
    %v79 = vsel %vm74, %v78, 0.0
    %s80 = scalar_lea.vmem [#allocation4], 1
    %v81 = vld [vmem:[%s80] ss:$0 sm:$0xff]
    %v82 = vxor.u32 %v81, 2147483648
    %v83 = vlaneseq
    %v84 = vand.u32 %v83, 127
    %vm85 = vcmp.eq.s32.totalorder %v84, 1
    %v86 = vmul.f32 %v82, %v79
    %87 = vadd.xlane.f32.xlu0 %v86
    %v88 = vpop.xlane.xlu0 %87
    %v89 = vsel %vm85, %v88, %v79
    %s90 = scalar_lea.vmem [#allocation4], 2
    %v91 = vld [vmem:[%s90] ss:$0 sm:$0xff]
    %v92 = vxor.u32 %v91, 2147483648
    %v93 = vlaneseq
    %v94 = vand.u32 %v93, 127
    %vm95 = vcmp.eq.s32.totalorder %v94, 2
    %v96 = vmul.f32 %v92, %v89
    %97 = vadd.xlane.f32.xlu0 %v96
    %v98 = vpop.xlane.xlu0 %97
    %v99 = vsel %vm95, %v98, %v89
    %v100 = vrcp.pop %v49
    %v101 = vmul.f32 %v49, %v100
    %v102 = vsub.f32 1.0, %v101
    %v103 = vmul.f32 %v100, %v102
    %v104 = vadd.f32 %v100, %v103
    %vm105 = vweird.f32 %v49
    %vm106 = vweird.f32 %v100
    %vm107 = vmor %vm105, %vm106
    %v108 = vsel %vm107, %v100, %v104
    %v109 = vand.u32 2147483647, %v49
    %vm110 = vcmp.eq.f32.partialorder %v109, 8.507059e+37
    %v111 = vand.u32 %v49, 2147483648
    %v112 = vor.u32 1.1754944e-38, %v111
    %v113 = vsel %vm110, %v112, %v108
    %v114 = vmul.f32 %v99, %v113
    %vm115 = vweird.f32 %v49
    %v116 = vsel %vm115, %v99, %v114
    %117 = vst [vmem:[#allocation2] sm:$0xff] %v116
    %s119 = ssub.s32 16, 1
    %v120 = vld [vmem:[#allocation2] sm:%s119]
    %s122 = ssub.s32 16, 1
    %123 = vst [vmem:[#allocation3] sm:%s122] %v120
    // Predicated region
    $region32: #{custom-call.13} parent=1 // pred_check
      _
    $region33: #{custom-call.13} parent=1 // pred_check_branch
      %125 = sbr.rel (0) target = $region35
    $region34: #{custom-call.13} parent=1 // pred_region
      // Predicated region
      $region36: #{custom-call.13} parent=34 // pred_check
        _
      $region37: #{custom-call.13} parent=34 // pred_check_branch
        %127 = sbr.rel target = $region39
      $region38: #{custom-call.13} parent=34 // pred_region
        // Predicated region
        $region51: #{custom-call.13} parent=38 // pred_check
          _
        $region52: #{custom-call.13} parent=38 // pred_check_branch
          %143 = sbr.rel (0) target = $region54
        $region53: #{custom-call.13} parent=38 // pred_region
          %s145 = ssub.s32 16, 1
          loop: start=0, step=1, limit=1
          $region55: #{custom-call.13} parent=53 // loop_pre_header
            _
          $region56: #{custom-call.13} parent=53 // loop_header
            %s147 = sphi 0, %s151
            %p148 = scmp.ge.s32.totalorder %s147, 1
            %s152 = sphi [#allocation3], [#allocation3]
            %s153 = sphi %s1, %s1
          $region57: #{custom-call.13} parent=53 // loop_header_branch
            %150 = sbr.rel (%p148) target = $region61
          $region58: #{custom-call.13} parent=53 // loop_body
            %v154 = vld [vmem:[%s152] sm:%s145]
            %155 = vst [vmem:[%s153] sm:%s145] %v154
          $region59: #{custom-call.13} parent=53 // loop_footer
            %s151 = sadd.s32 1, %s147
          $region60: #{custom-call.13} parent=53 // loop_footer_branch
            %146 = sbr.rel target = $region56
          $region61: #{custom-call.13} parent=53 // loop_exit
            _
        $region54: #{custom-call.13} parent=38 // pred_fallthru
          _
      $region39: #{custom-call.13} parent=34 // pred_fallthru
        _
      // Predicated region
      $region40: #{custom-call.13} parent=34 // pred_check
        _
      $region41: #{custom-call.13} parent=34 // pred_check_branch
        %129 = sbr.rel (0) target = $region43
      $region42: #{custom-call.13} parent=34 // pred_region
        %s131 = ssub.s32 16, 1
        loop: start=0, step=1, limit=1
        $region44: #{custom-call.13} parent=42 // loop_pre_header
          _
        $region45: #{custom-call.13} parent=42 // loop_header
          %s133 = sphi 0, %s137
          %p134 = scmp.ge.s32.totalorder %s133, 1
          %s138 = sphi [#allocation3], [#allocation3]
          %s139 = sphi %s1, %s1
        $region46: #{custom-call.13} parent=42 // loop_header_branch
          %136 = sbr.rel (%p134) target = $region50
        $region47: #{custom-call.13} parent=42 // loop_body
          %v140 = vld [vmem:[%s138] sm:%s131]
          %141 = vst [vmem:[%s139] sm:%s131] %v140
        $region48: #{custom-call.13} parent=42 // loop_footer
          %s137 = sadd.s32 1, %s133
        $region49: #{custom-call.13} parent=42 // loop_footer_branch
          %132 = sbr.rel target = $region45
        $region50: #{custom-call.13} parent=42 // loop_exit
          _
      $region43: #{custom-call.13} parent=34 // pred_fallthru
        _
    $region35: #{custom-call.13} parent=1 // pred_fallthru
      _
    %156 = vnop

// kernel: create_rays_pallas.1
$region0: #{create_rays_pallas.1}
  #allocation0 [shape = 'u32[]', space=smem, size = 0x4, offset = 0x4, fixed_abs, tag = 'smem constant byte address 0x4 - core index']
  #allocation1 [shape = 'u32[72,128]{1,0:T(1,128)}', space=vmem, size = 0x9000, scoped, tag = 'internal scratch']
  %s0 = inlined_call_operand.vmem [shape: f32[11], index: 0, kind: input, shape index: {}]
  %s1 = inlined_call_operand.vmem [shape: f32[3,384,128], index: 1, kind: output, shape index: {}]
  %s2 = sld [smem:[#allocation0]]
  $region75: #{create_rays_pallas.1} parent=0
    _
  %s4 = ssub.s32 1, %s2
  %s5 = scalar_select 0, %s4, %s2
  $region1: #{create_rays_pallas.1} parent=0
    #allocation2 [shape = 'u8[512]{0}', space=smem, size = 0x200, scoped, tag = 'input window, operand 0, single buffered']
    #allocation3 [shape = 's32[2]{0}', space=sflag, size = 0x8, scoped, tag = 'scoped memory for create_rays_pallas.1']
    #allocation4 [shape = 'u8[589824]{0}', space=vmem, size = 0x90000, scoped, tag = 'output window, operand 0']
    %6 = vsyncpa [#allocation3], 0
    loop: start=0, step=1, limit=4
    $region2: #{create_rays_pallas.1} parent=1 // loop_pre_header
      _
    $region3: #{create_rays_pallas.1} parent=1 // loop_header
      %s8 = sphi 0, %s12
      %p9 = scmp.ge.s32.totalorder %s8, 4
      %s16 = sphi 0, %s16
      %s18 = sphi 0, %s16
      %s19 = sphi 0, %s18
      %s33 = sphi 0, %s19
      %s39 = sphi 0, %s41
      %s42 = sphi 0, %s39
      %s43 = sphi 0, %s42
      %s59 = sphi 0, %s43
    $region4: #{create_rays_pallas.1} parent=1 // loop_header_branch
      %11 = sbr.rel (%p9) target = $region8
    $region5: #{create_rays_pallas.1} parent=1 // loop_body
      %s13 = ssub.s32 %s8, 1
      %s14 = ssub.s32 %s8, 2
      %s15 = sadd.s32 %s8, 1
      %s17 = sadd.s32 %s16, 1
      %p20 = scmp.eq.s32.totalorder %s8, 1
      %p21 = scmp.ne.s32.totalorder %s16, %s18
      %p22 = scmp.eq.s32.totalorder %s8, 0
      %p23 = por %p21, %p22
      %p24 = scmp.ne.s32.totalorder %s16, %s18
      %p25 = scmp.eq.s32.totalorder %s13, 1
      %p26 = por %p24, %p25
      %p27 = scmp.ne.s32.totalorder %s18, %s19
      %p28 = scmp.eq.s32.totalorder %s13, 0
      %p29 = por %p27, %p28
      %p30 = scmp.ne.s32.totalorder %s18, %s19
      %p31 = scmp.eq.s32.totalorder %s14, 1
      %p32 = por %p30, %p31
      %p34 = scmp.ne.s32.totalorder %s19, %s33
      %p35 = scmp.eq.s32.totalorder %s14, 0
      %p36 = por %p34, %p35
      %s37 = ssub.s32 %s8, %s15
      %p38 = scmp.eq.s32.totalorder %s37, 0
      %s40 = sadd.s32 %s39, 1
      %s41 = scalar_select %p38, %s39, %s40
      %p44 = pneg %p38
      %p45 = scmp.eq.s32.totalorder %s8, 1
      %p46 = por %p44, %p45
      %p47 = scmp.ne.s32.totalorder %s39, %s42
      %p48 = scmp.eq.s32.totalorder %s8, 0
      %p49 = por %p47, %p48
      %p50 = scmp.ne.s32.totalorder %s39, %s42
      %p51 = scmp.eq.s32.totalorder %s13, 1
      %p52 = por %p50, %p51
      %p53 = scmp.ne.s32.totalorder %s42, %s43
      %p54 = scmp.eq.s32.totalorder %s13, 0
      %p55 = por %p53, %p54
      %p56 = scmp.ne.s32.totalorder %s42, %s43
      %p57 = scmp.eq.s32.totalorder %s14, 1
      %p58 = por %p56, %p57
      %p60 = scmp.ne.s32.totalorder %s43, %s59
      %p61 = scmp.eq.s32.totalorder %s14, 0
      %p62 = por %p60, %p61
      %p63 = scmp.le.s32.totalorder 1, %s8
      %p64 = scmp.lt.s32.totalorder %s8, 3
      %p65 = pnand %p63, %p64
      %p66 = pneg %p65
      // Predicated region
      $region9: #{create_rays_pallas.1} parent=5 // pred_check
        _
      $region10: #{create_rays_pallas.1} parent=5 // pred_check_branch
        %68 = sbr.rel (%p65) target = $region12
      $region11: #{create_rays_pallas.1} parent=5 // pred_region
        %s69 = ssub.s32 %s8, 1
        // Predicated region
        $region13: #{create_rays_pallas.1} parent=11 // pred_check
          %p70 = pneg %p29
        $region14: #{create_rays_pallas.1} parent=11 // pred_check_branch
          %72 = sbr.rel (%p70) target = $region16
        $region15: #{create_rays_pallas.1} parent=11 // pred_region
          %74 = vsyncadd [#allocation3], 0
          %s76 = sshll.u32 %s0, 4
          %s77 = int_to_ptr.vmem [resolvable:$true] %s76
          %79 = dma.vmem_to_smem %s77, 16, [#allocation2], [#allocation3]
        $region16: #{create_rays_pallas.1} parent=11 // pred_fallthru
          _
      $region12: #{create_rays_pallas.1} parent=5 // pred_fallthru
        _
      %p80 = scmp.lt.s32.totalorder %s8, 2
      // Predicated region
      $region17: #{create_rays_pallas.1} parent=5 // pred_check
        %p81 = pneg %p80
      $region18: #{create_rays_pallas.1} parent=5 // pred_check_branch
        %83 = sbr.rel (%p81) target = $region20
      $region19: #{create_rays_pallas.1} parent=5 // pred_region
        _
      $region20: #{create_rays_pallas.1} parent=5 // pred_fallthru
        _
      %p84 = scmp.le.s32.totalorder 1, %s8
      %p85 = scmp.lt.s32.totalorder %s8, 3
      %p86 = pnand %p84, %p85
      %p87 = pneg %p86
      // Predicated region
      $region21: #{create_rays_pallas.1} parent=5 // pred_check
        _
      $region22: #{create_rays_pallas.1} parent=5 // pred_check_branch
        %89 = sbr.rel (%p86) target = $region24
      $region23: #{create_rays_pallas.1} parent=5 // pred_region
        %s90 = ssub.s32 %s8, 1
        // Predicated region
        $region25: #{create_rays_pallas.1} parent=23 // pred_check
          %p91 = pneg %p29
        $region26: #{create_rays_pallas.1} parent=23 // pred_check_branch
          %93 = sbr.rel (%p91) target = $region28
        $region27: #{create_rays_pallas.1} parent=23 // pred_region
          %95 = dma.done [#allocation3], 16
        $region28: #{create_rays_pallas.1} parent=23 // pred_fallthru
          _
        %96 = sfence
        %p97 = pneg %p29
        %p98 = pneg %p26
        %p99 = pneg %p55
        %p100 = pneg %p52
        %s101 = sand.u32 %s42, 1
        %s102 = sand.u32 %s42, 1
        %s103 = smul.addr %s102, 576
        %s104 = scalar_lea.vmem [#allocation4], %s103
        %s105 = smul.u32 24, %s13
        %s106 = smul.u32 %s13, 24576
        %v107 = vlaneseq
        %v108 = vshrl.u32 %v107, 7
        %v109 = vadd.s32 %v108, 8
        %v110 = vadd.s32 %v108, 16
        %v111 = vadd.s32 %v108, 24
        %v112 = vadd.s32 %v108, 32
        %v113 = vadd.s32 %v108, 40
        %v114 = vadd.s32 %v108, 48
        %v115 = vadd.s32 %v108, 56
        %v116 = vadd.s32 %v108, 64
        %v117 = vadd.s32 %v108, 72
        %v118 = vadd.s32 %v108, 80
        %v119 = vadd.s32 %v108, 88
        %v120 = vadd.s32 %v108, 96
        %v121 = vadd.s32 %v108, 104
        %v122 = vadd.s32 %v108, 112
        %v123 = vadd.s32 %v108, 120
        %v124 = vadd.s32 %v108, 128
        %v125 = vadd.s32 %v108, 136
        %v126 = vadd.s32 %v108, 144
        %v127 = vadd.s32 %v108, 152
        %v128 = vadd.s32 %v108, 160
        %v129 = vadd.s32 %v108, 168
        %v130 = vadd.s32 %v108, 176
        %v131 = vadd.s32 %v108, 184
        %v132 = vlaneseq
        %v133 = vand.u32 %v132, 127
        %v134 = vmul.u32 %v108, 128
        %v135 = vmul.u32 %v109, 128
        %v136 = vmul.u32 %v110, 128
        %v137 = vmul.u32 %v111, 128
        %v138 = vmul.u32 %v112, 128
        %v139 = vmul.u32 %v113, 128
        %v140 = vmul.u32 %v114, 128
        %v141 = vmul.u32 %v115, 128
        %v142 = vmul.u32 %v116, 128
        %v143 = vmul.u32 %v117, 128
        %v144 = vmul.u32 %v118, 128
        %v145 = vmul.u32 %v119, 128
        %v146 = vmul.u32 %v120, 128
        %v147 = vmul.u32 %v121, 128
        %v148 = vmul.u32 %v122, 128
        %v149 = vmul.u32 %v123, 128
        %v150 = vmul.u32 %v124, 128
        %v151 = vmul.u32 %v125, 128
        %v152 = vmul.u32 %v126, 128
        %v153 = vmul.u32 %v127, 128
        %v154 = vmul.u32 %v128, 128
        %v155 = vmul.u32 %v129, 128
        %v156 = vmul.u32 %v130, 128
        %v157 = vmul.u32 %v131, 128
        %v158 = vstv %s106
        %v159 = vadd.s32 %v158, %v134
        %v160 = vadd.s32 %v158, %v135
        %v161 = vadd.s32 %v158, %v136
        %v162 = vadd.s32 %v158, %v137
        %v163 = vadd.s32 %v158, %v138
        %v164 = vadd.s32 %v158, %v139
        %v165 = vadd.s32 %v158, %v140
        %v166 = vadd.s32 %v158, %v141
        %v167 = vadd.s32 %v158, %v142
        %v168 = vadd.s32 %v158, %v143
        %v169 = vadd.s32 %v158, %v144
        %v170 = vadd.s32 %v158, %v145
        %v171 = vadd.s32 %v158, %v146
        %v172 = vadd.s32 %v158, %v147
        %v173 = vadd.s32 %v158, %v148
        %v174 = vadd.s32 %v158, %v149
        %v175 = vadd.s32 %v158, %v150
        %v176 = vadd.s32 %v158, %v151
        %v177 = vadd.s32 %v158, %v152
        %v178 = vadd.s32 %v158, %v153
        %v179 = vadd.s32 %v158, %v154
        %v180 = vadd.s32 %v158, %v155
        %v181 = vadd.s32 %v158, %v156
        %v182 = vadd.s32 %v158, %v157
        %v183 = vadd.s32 %v159, %v133
        %v184 = vadd.s32 %v160, %v133
        %v185 = vadd.s32 %v161, %v133
        %v186 = vadd.s32 %v162, %v133
        %v187 = vadd.s32 %v163, %v133
        %v188 = vadd.s32 %v164, %v133
        %v189 = vadd.s32 %v165, %v133
        %v190 = vadd.s32 %v166, %v133
        %v191 = vadd.s32 %v167, %v133
        %v192 = vadd.s32 %v168, %v133
        %v193 = vadd.s32 %v169, %v133
        %v194 = vadd.s32 %v170, %v133
        %v195 = vadd.s32 %v171, %v133
        %v196 = vadd.s32 %v172, %v133
        %v197 = vadd.s32 %v173, %v133
        %v198 = vadd.s32 %v174, %v133
        %v199 = vadd.s32 %v175, %v133
        %v200 = vadd.s32 %v176, %v133
        %v201 = vadd.s32 %v177, %v133
        %v202 = vadd.s32 %v178, %v133
        %v203 = vadd.s32 %v179, %v133
        %v204 = vadd.s32 %v180, %v133
        %v205 = vadd.s32 %v181, %v133
        %v206 = vadd.s32 %v182, %v133
        %v207 = vcvt.s32.f32 %v183
        %v208 = vcvt.s32.f32 %v184
        %v209 = vcvt.s32.f32 %v185
        %v210 = vcvt.s32.f32 %v186
        %v211 = vcvt.s32.f32 %v187
        %v212 = vcvt.s32.f32 %v188
        %v213 = vcvt.s32.f32 %v189
        %v214 = vcvt.s32.f32 %v190
        %v215 = vcvt.s32.f32 %v191
        %v216 = vcvt.s32.f32 %v192
        %v217 = vcvt.s32.f32 %v193
        %v218 = vcvt.s32.f32 %v194
        %v219 = vcvt.s32.f32 %v195
        %v220 = vcvt.s32.f32 %v196
        %v221 = vcvt.s32.f32 %v197
        %v222 = vcvt.s32.f32 %v198
        %v223 = vcvt.s32.f32 %v199
        %v224 = vcvt.s32.f32 %v200
        %v225 = vcvt.s32.f32 %v201
        %v226 = vcvt.s32.f32 %v202
        %v227 = vcvt.s32.f32 %v203
        %v228 = vcvt.s32.f32 %v204
        %v229 = vcvt.s32.f32 %v205
        %v230 = vcvt.s32.f32 %v206
        %s231 = sld [smem:[#allocation2 + $0x9]]
        %s232 = sld [smem:[#allocation2 + $0xa]]
        %v233 = vstv %s232
        %v234 = vmul.f32 %v207, %v233
        %v235 = vmul.f32 %v208, %v233
        %v236 = vmul.f32 %v209, %v233
        %v237 = vmul.f32 %v210, %v233
        %v238 = vmul.f32 %v211, %v233
        %v239 = vmul.f32 %v212, %v233
        %v240 = vmul.f32 %v213, %v233
        %v241 = vmul.f32 %v214, %v233
        %v242 = vmul.f32 %v215, %v233
        %v243 = vmul.f32 %v216, %v233
        %v244 = vmul.f32 %v217, %v233
        %v245 = vmul.f32 %v218, %v233
        %v246 = vmul.f32 %v219, %v233
        %v247 = vmul.f32 %v220, %v233
        %v248 = vmul.f32 %v221, %v233
        %v249 = vmul.f32 %v222, %v233
        %v250 = vmul.f32 %v223, %v233
        %v251 = vmul.f32 %v224, %v233
        %v252 = vmul.f32 %v225, %v233
        %v253 = vmul.f32 %v226, %v233
        %v254 = vmul.f32 %v227, %v233
        %v255 = vmul.f32 %v228, %v233
        %v256 = vmul.f32 %v229, %v233
        %v257 = vmul.f32 %v230, %v233
        %v258 = vfloor.f32 %v234
        %v259 = vfloor.f32 %v235
        %v260 = vfloor.f32 %v236
        %v261 = vfloor.f32 %v237
        %v262 = vfloor.f32 %v238
        %v263 = vfloor.f32 %v239
        %v264 = vfloor.f32 %v240
        %v265 = vfloor.f32 %v241
        %v266 = vfloor.f32 %v242
        %v267 = vfloor.f32 %v243
        %v268 = vfloor.f32 %v244
        %v269 = vfloor.f32 %v245
        %v270 = vfloor.f32 %v246
        %v271 = vfloor.f32 %v247
        %v272 = vfloor.f32 %v248
        %v273 = vfloor.f32 %v249
        %v274 = vfloor.f32 %v250
        %v275 = vfloor.f32 %v251
        %v276 = vfloor.f32 %v252
        %v277 = vfloor.f32 %v253
        %v278 = vfloor.f32 %v254
        %v279 = vfloor.f32 %v255
        %v280 = vfloor.f32 %v256
        %v281 = vfloor.f32 %v257
        %v282 = vstv %s231
        %v283 = vmul.f32 %v258, %v282
        %v284 = vmul.f32 %v259, %v282
        %v285 = vmul.f32 %v260, %v282
        %v286 = vmul.f32 %v261, %v282
        %v287 = vmul.f32 %v262, %v282
        %v288 = vmul.f32 %v263, %v282
        %v289 = vmul.f32 %v264, %v282
        %v290 = vmul.f32 %v265, %v282
        %v291 = vmul.f32 %v266, %v282
        %v292 = vmul.f32 %v267, %v282
        %v293 = vmul.f32 %v268, %v282
        %v294 = vmul.f32 %v269, %v282
        %v295 = vmul.f32 %v270, %v282
        %v296 = vmul.f32 %v271, %v282
        %v297 = vmul.f32 %v272, %v282
        %v298 = vmul.f32 %v273, %v282
        %v299 = vmul.f32 %v274, %v282
        %v300 = vmul.f32 %v275, %v282
        %v301 = vmul.f32 %v276, %v282
        %v302 = vmul.f32 %v277, %v282
        %v303 = vmul.f32 %v278, %v282
        %v304 = vmul.f32 %v279, %v282
        %v305 = vmul.f32 %v280, %v282
        %v306 = vmul.f32 %v281, %v282
        %v307 = vsub.f32 %v207, %v283
        %v308 = vsub.f32 %v208, %v284
        %v309 = vsub.f32 %v209, %v285
        %v310 = vsub.f32 %v210, %v286
        %v311 = vsub.f32 %v211, %v287
        %v312 = vsub.f32 %v212, %v288
        %v313 = vsub.f32 %v213, %v289
        %v314 = vsub.f32 %v214, %v290
        %v315 = vsub.f32 %v215, %v291
        %v316 = vsub.f32 %v216, %v292
        %v317 = vsub.f32 %v217, %v293
        %v318 = vsub.f32 %v218, %v294
        %v319 = vsub.f32 %v219, %v295
        %v320 = vsub.f32 %v220, %v296
        %v321 = vsub.f32 %v221, %v297
        %v322 = vsub.f32 %v222, %v298
        %v323 = vsub.f32 %v223, %v299
        %v324 = vsub.f32 %v224, %v300
        %v325 = vsub.f32 %v225, %v301
        %v326 = vsub.f32 %v226, %v302
        %v327 = vsub.f32 %v227, %v303
        %v328 = vsub.f32 %v228, %v304
        %v329 = vsub.f32 %v229, %v305
        %v330 = vsub.f32 %v230, %v306
        %vm331 = vcmp.lt.f32.partialorder %v307, 0.0
        %vm332 = vcmp.lt.f32.partialorder %v308, 0.0
        %vm333 = vcmp.lt.f32.partialorder %v309, 0.0
        %vm334 = vcmp.lt.f32.partialorder %v310, 0.0
        %vm335 = vcmp.lt.f32.partialorder %v311, 0.0
        %vm336 = vcmp.lt.f32.partialorder %v312, 0.0
        %vm337 = vcmp.lt.f32.partialorder %v313, 0.0
        %vm338 = vcmp.lt.f32.partialorder %v314, 0.0
        %vm339 = vcmp.lt.f32.partialorder %v315, 0.0
        %vm340 = vcmp.lt.f32.partialorder %v316, 0.0
        %vm341 = vcmp.lt.f32.partialorder %v317, 0.0
        %vm342 = vcmp.lt.f32.partialorder %v318, 0.0
        %vm343 = vcmp.lt.f32.partialorder %v319, 0.0
        %vm344 = vcmp.lt.f32.partialorder %v320, 0.0
        %vm345 = vcmp.lt.f32.partialorder %v321, 0.0
        %vm346 = vcmp.lt.f32.partialorder %v322, 0.0
        %vm347 = vcmp.lt.f32.partialorder %v323, 0.0
        %vm348 = vcmp.lt.f32.partialorder %v324, 0.0
        %vm349 = vcmp.lt.f32.partialorder %v325, 0.0
        %vm350 = vcmp.lt.f32.partialorder %v326, 0.0
        %vm351 = vcmp.lt.f32.partialorder %v327, 0.0
        %vm352 = vcmp.lt.f32.partialorder %v328, 0.0
        %vm353 = vcmp.lt.f32.partialorder %v329, 0.0
        %vm354 = vcmp.lt.f32.partialorder %v330, 0.0
        %v355 = vsub.f32 %v258, 1.0
        %v356 = vsub.f32 %v259, 1.0
        %v357 = vsub.f32 %v260, 1.0
        %v358 = vsub.f32 %v261, 1.0
        %v359 = vsub.f32 %v262, 1.0
        %v360 = vsub.f32 %v263, 1.0
        %v361 = vsub.f32 %v264, 1.0
        %v362 = vsub.f32 %v265, 1.0
        %v363 = vsub.f32 %v266, 1.0
        %v364 = vsub.f32 %v267, 1.0
        %v365 = vsub.f32 %v268, 1.0
        %v366 = vsub.f32 %v269, 1.0
        %v367 = vsub.f32 %v270, 1.0
        %v368 = vsub.f32 %v271, 1.0
        %v369 = vsub.f32 %v272, 1.0
        %v370 = vsub.f32 %v273, 1.0
        %v371 = vsub.f32 %v274, 1.0
        %v372 = vsub.f32 %v275, 1.0
        %v373 = vsub.f32 %v276, 1.0
        %v374 = vsub.f32 %v277, 1.0
        %v375 = vsub.f32 %v278, 1.0
        %v376 = vsub.f32 %v279, 1.0
        %v377 = vsub.f32 %v280, 1.0
        %v378 = vsub.f32 %v281, 1.0
        %v379 = vsel %vm331, %v355, %v258
        %v380 = vsel %vm332, %v356, %v259
        %v381 = vsel %vm333, %v357, %v260
        %v382 = vsel %vm334, %v358, %v261
        %v383 = vsel %vm335, %v359, %v262
        %v384 = vsel %vm336, %v360, %v263
        %v385 = vsel %vm337, %v361, %v264
        %v386 = vsel %vm338, %v362, %v265
        %v387 = vsel %vm339, %v363, %v266
        %v388 = vsel %vm340, %v364, %v267
        %v389 = vsel %vm341, %v365, %v268
        %v390 = vsel %vm342, %v366, %v269
        %v391 = vsel %vm343, %v367, %v270
        %v392 = vsel %vm344, %v368, %v271
        %v393 = vsel %vm345, %v369, %v272
        %v394 = vsel %vm346, %v370, %v273
        %v395 = vsel %vm347, %v371, %v274
        %v396 = vsel %vm348, %v372, %v275
        %v397 = vsel %vm349, %v373, %v276
        %v398 = vsel %vm350, %v374, %v277
        %v399 = vsel %vm351, %v375, %v278
        %v400 = vsel %vm352, %v376, %v279
        %v401 = vsel %vm353, %v377, %v280
        %v402 = vsel %vm354, %v378, %v281
        %v403 = vadd.f32 %v307, %v282
        %v404 = vadd.f32 %v308, %v282
        %v405 = vadd.f32 %v309, %v282
        %v406 = vadd.f32 %v310, %v282
        %v407 = vadd.f32 %v311, %v282
        %v408 = vadd.f32 %v312, %v282
        %v409 = vadd.f32 %v313, %v282
        %v410 = vadd.f32 %v314, %v282
        %v411 = vadd.f32 %v315, %v282
        %v412 = vadd.f32 %v316, %v282
        %v413 = vadd.f32 %v317, %v282
        %v414 = vadd.f32 %v318, %v282
        %v415 = vadd.f32 %v319, %v282
        %v416 = vadd.f32 %v320, %v282
        %v417 = vadd.f32 %v321, %v282
        %v418 = vadd.f32 %v322, %v282
        %v419 = vadd.f32 %v323, %v282
        %v420 = vadd.f32 %v324, %v282
        %v421 = vadd.f32 %v325, %v282
        %v422 = vadd.f32 %v326, %v282
        %v423 = vadd.f32 %v327, %v282
        %v424 = vadd.f32 %v328, %v282
        %v425 = vadd.f32 %v329, %v282
        %v426 = vadd.f32 %v330, %v282
        %v427 = vsel %vm331, %v403, %v307
        %v428 = vsel %vm332, %v404, %v308
        %v429 = vsel %vm333, %v405, %v309
        %v430 = vsel %vm334, %v406, %v310
        %v431 = vsel %vm335, %v407, %v311
        %v432 = vsel %vm336, %v408, %v312
        %v433 = vsel %vm337, %v409, %v313
        %v434 = vsel %vm338, %v410, %v314
        %v435 = vsel %vm339, %v411, %v315
        %v436 = vsel %vm340, %v412, %v316
        %v437 = vsel %vm341, %v413, %v317
        %v438 = vsel %vm342, %v414, %v318
        %v439 = vsel %vm343, %v415, %v319
        %v440 = vsel %vm344, %v416, %v320
        %v441 = vsel %vm345, %v417, %v321
        %v442 = vsel %vm346, %v418, %v322
        %v443 = vsel %vm347, %v419, %v323
        %v444 = vsel %vm348, %v420, %v324
        %v445 = vsel %vm349, %v421, %v325
        %v446 = vsel %vm350, %v422, %v326
        %v447 = vsel %vm351, %v423, %v327
        %v448 = vsel %vm352, %v424, %v328
        %v449 = vsel %vm353, %v425, %v329
        %v450 = vsel %vm354, %v426, %v330
        %vm451 = vcmp.ge.f32.partialorder %v427, %v282
        %vm452 = vcmp.ge.f32.partialorder %v428, %v282
        %vm453 = vcmp.ge.f32.partialorder %v429, %v282
        %vm454 = vcmp.ge.f32.partialorder %v430, %v282
        %vm455 = vcmp.ge.f32.partialorder %v431, %v282
        %vm456 = vcmp.ge.f32.partialorder %v432, %v282
        %vm457 = vcmp.ge.f32.partialorder %v433, %v282
        %vm458 = vcmp.ge.f32.partialorder %v434, %v282
        %vm459 = vcmp.ge.f32.partialorder %v435, %v282
        %vm460 = vcmp.ge.f32.partialorder %v436, %v282
        %vm461 = vcmp.ge.f32.partialorder %v437, %v282
        %vm462 = vcmp.ge.f32.partialorder %v438, %v282
        %vm463 = vcmp.ge.f32.partialorder %v439, %v282
        %vm464 = vcmp.ge.f32.partialorder %v440, %v282
        %vm465 = vcmp.ge.f32.partialorder %v441, %v282
        %vm466 = vcmp.ge.f32.partialorder %v442, %v282
        %vm467 = vcmp.ge.f32.partialorder %v443, %v282
        %vm468 = vcmp.ge.f32.partialorder %v444, %v282
        %vm469 = vcmp.ge.f32.partialorder %v445, %v282
        %vm470 = vcmp.ge.f32.partialorder %v446, %v282
        %vm471 = vcmp.ge.f32.partialorder %v447, %v282
        %vm472 = vcmp.ge.f32.partialorder %v448, %v282
        %vm473 = vcmp.ge.f32.partialorder %v449, %v282
        %vm474 = vcmp.ge.f32.partialorder %v450, %v282
        %v475 = vadd.f32 %v379, 1.0
        %v476 = vadd.f32 %v380, 1.0
        %v477 = vadd.f32 %v381, 1.0
        %v478 = vadd.f32 %v382, 1.0
        %v479 = vadd.f32 %v383, 1.0
        %v480 = vadd.f32 %v384, 1.0
        %v481 = vadd.f32 %v385, 1.0
        %v482 = vadd.f32 %v386, 1.0
        %v483 = vadd.f32 %v387, 1.0
        %v484 = vadd.f32 %v388, 1.0
        %v485 = vadd.f32 %v389, 1.0
        %v486 = vadd.f32 %v390, 1.0
        %v487 = vadd.f32 %v391, 1.0
        %v488 = vadd.f32 %v392, 1.0
        %v489 = vadd.f32 %v393, 1.0
        %v490 = vadd.f32 %v394, 1.0
        %v491 = vadd.f32 %v395, 1.0
        %v492 = vadd.f32 %v396, 1.0
        %v493 = vadd.f32 %v397, 1.0
        %v494 = vadd.f32 %v398, 1.0
        %v495 = vadd.f32 %v399, 1.0
        %v496 = vadd.f32 %v400, 1.0
        %v497 = vadd.f32 %v401, 1.0
        %v498 = vadd.f32 %v402, 1.0
        %v499 = vsel %vm451, %v475, %v379
        %v500 = vsel %vm452, %v476, %v380
        %v501 = vsel %vm453, %v477, %v381
        %v502 = vsel %vm454, %v478, %v382
        %v503 = vsel %vm455, %v479, %v383
        %v504 = vsel %vm456, %v480, %v384
        %v505 = vsel %vm457, %v481, %v385
        %v506 = vsel %vm458, %v482, %v386
        %v507 = vsel %vm459, %v483, %v387
        %v508 = vsel %vm460, %v484, %v388
        %v509 = vsel %vm461, %v485, %v389
        %v510 = vsel %vm462, %v486, %v390
        %v511 = vsel %vm463, %v487, %v391
        %v512 = vsel %vm464, %v488, %v392
        %v513 = vsel %vm465, %v489, %v393
        %v514 = vsel %vm466, %v490, %v394
        %v515 = vsel %vm467, %v491, %v395
        %v516 = vsel %vm468, %v492, %v396
        %v517 = vsel %vm469, %v493, %v397
        %v518 = vsel %vm470, %v494, %v398
        %v519 = vsel %vm471, %v495, %v399
        %v520 = vsel %vm472, %v496, %v400
        %v521 = vsel %vm473, %v497, %v401
        %v522 = vsel %vm474, %v498, %v402
        %v523 = vsub.f32 %v427, %v282
        %v524 = vsub.f32 %v428, %v282
        %v525 = vsub.f32 %v429, %v282
        %v526 = vsub.f32 %v430, %v282
        %v527 = vsub.f32 %v431, %v282
        %v528 = vsub.f32 %v432, %v282
        %v529 = vsub.f32 %v433, %v282
        %v530 = vsub.f32 %v434, %v282
        %v531 = vsub.f32 %v435, %v282
        %v532 = vsub.f32 %v436, %v282
        %v533 = vsub.f32 %v437, %v282
        %v534 = vsub.f32 %v438, %v282
        %v535 = vsub.f32 %v439, %v282
        %v536 = vsub.f32 %v440, %v282
        %v537 = vsub.f32 %v441, %v282
        %v538 = vsub.f32 %v442, %v282
        %v539 = vsub.f32 %v443, %v282
        %v540 = vsub.f32 %v444, %v282
        %v541 = vsub.f32 %v445, %v282
        %v542 = vsub.f32 %v446, %v282
        %v543 = vsub.f32 %v447, %v282
        %v544 = vsub.f32 %v448, %v282
        %v545 = vsub.f32 %v449, %v282
        %v546 = vsub.f32 %v450, %v282
        %v547 = vsel %vm451, %v523, %v427
        %v548 = vsel %vm452, %v524, %v428
        %v549 = vsel %vm453, %v525, %v429
        %v550 = vsel %vm454, %v526, %v430
        %v551 = vsel %vm455, %v527, %v431
        %v552 = vsel %vm456, %v528, %v432
        %v553 = vsel %vm457, %v529, %v433
        %v554 = vsel %vm458, %v530, %v434
        %v555 = vsel %vm459, %v531, %v435
        %v556 = vsel %vm460, %v532, %v436
        %v557 = vsel %vm461, %v533, %v437
        %v558 = vsel %vm462, %v534, %v438
        %v559 = vsel %vm463, %v535, %v439
        %v560 = vsel %vm464, %v536, %v440
        %v561 = vsel %vm465, %v537, %v441
        %v562 = vsel %vm466, %v538, %v442
        %v563 = vsel %vm467, %v539, %v443
        %v564 = vsel %vm468, %v540, %v444
        %v565 = vsel %vm469, %v541, %v445
        %v566 = vsel %vm470, %v542, %v446
        %v567 = vsel %vm471, %v543, %v447
        %v568 = vsel %vm472, %v544, %v448
        %v569 = vsel %vm473, %v545, %v449
        %v570 = vsel %vm474, %v546, %v450
        %s571 = sld [smem:[#allocation2]]
        %v572 = vstv %s571
        %v573 = vmul.f32 %v572, %v547
        %v574 = vmul.f32 %v572, %v548
        %v575 = vmul.f32 %v572, %v549
        %v576 = vmul.f32 %v572, %v550
        %v577 = vmul.f32 %v572, %v551
        %v578 = vmul.f32 %v572, %v552
        %v579 = vmul.f32 %v572, %v553
        %v580 = vmul.f32 %v572, %v554
        %v581 = vmul.f32 %v572, %v555
        %v582 = vmul.f32 %v572, %v556
        %v583 = vmul.f32 %v572, %v557
        %v584 = vmul.f32 %v572, %v558
        %v585 = vmul.f32 %v572, %v559
        %v586 = vmul.f32 %v572, %v560
        %v587 = vmul.f32 %v572, %v561
        %v588 = vmul.f32 %v572, %v562
        %v589 = vmul.f32 %v572, %v563
        %v590 = vmul.f32 %v572, %v564
        %v591 = vmul.f32 %v572, %v565
        %v592 = vmul.f32 %v572, %v566
        %v593 = vmul.f32 %v572, %v567
        %v594 = vmul.f32 %v572, %v568
        %v595 = vmul.f32 %v572, %v569
        %v596 = vmul.f32 %v572, %v570
        %s597 = sld [smem:[#allocation2 + $0x1]]
        %v598 = vstv %s597
        %v599 = vmul.f32 %v598, %v499
        %v600 = vmul.f32 %v598, %v500
        %v601 = vmul.f32 %v598, %v501
        %v602 = vmul.f32 %v598, %v502
        %v603 = vmul.f32 %v598, %v503
        %v604 = vmul.f32 %v598, %v504
        %v605 = vmul.f32 %v598, %v505
        %v606 = vmul.f32 %v598, %v506
        %v607 = vmul.f32 %v598, %v507
        %v608 = vmul.f32 %v598, %v508
        %v609 = vmul.f32 %v598, %v509
        %v610 = vmul.f32 %v598, %v510
        %v611 = vmul.f32 %v598, %v511
        %v612 = vmul.f32 %v598, %v512
        %v613 = vmul.f32 %v598, %v513
        %v614 = vmul.f32 %v598, %v514
        %v615 = vmul.f32 %v598, %v515
        %v616 = vmul.f32 %v598, %v516
        %v617 = vmul.f32 %v598, %v517
        %v618 = vmul.f32 %v598, %v518
        %v619 = vmul.f32 %v598, %v519
        %v620 = vmul.f32 %v598, %v520
        %v621 = vmul.f32 %v598, %v521
        %v622 = vmul.f32 %v598, %v522
        %v623 = vadd.f32 %v573, %v599
        %v624 = vadd.f32 %v574, %v600
        %v625 = vadd.f32 %v575, %v601
        %v626 = vadd.f32 %v576, %v602
        %v627 = vadd.f32 %v577, %v603
        %v628 = vadd.f32 %v578, %v604
        %v629 = vadd.f32 %v579, %v605
        %v630 = vadd.f32 %v580, %v606
        %v631 = vadd.f32 %v581, %v607
        %v632 = vadd.f32 %v582, %v608
        %v633 = vadd.f32 %v583, %v609
        %v634 = vadd.f32 %v584, %v610
        %v635 = vadd.f32 %v585, %v611
        %v636 = vadd.f32 %v586, %v612
        %v637 = vadd.f32 %v587, %v613
        %v638 = vadd.f32 %v588, %v614
        %v639 = vadd.f32 %v589, %v615
        %v640 = vadd.f32 %v590, %v616
        %v641 = vadd.f32 %v591, %v617
        %v642 = vadd.f32 %v592, %v618
        %v643 = vadd.f32 %v593, %v619
        %v644 = vadd.f32 %v594, %v620
        %v645 = vadd.f32 %v595, %v621
        %v646 = vadd.f32 %v596, %v622
        %s647 = sld [smem:[#allocation2 + $0x2]]
        %v648 = vstv %s647
        %v649 = vadd.f32 %v623, %v648
        %v650 = vadd.f32 %v624, %v648
        %v651 = vadd.f32 %v625, %v648
        %v652 = vadd.f32 %v626, %v648
        %v653 = vadd.f32 %v627, %v648
        %v654 = vadd.f32 %v628, %v648
        %v655 = vadd.f32 %v629, %v648
        %v656 = vadd.f32 %v630, %v648
        %v657 = vadd.f32 %v631, %v648
        %v658 = vadd.f32 %v632, %v648
        %v659 = vadd.f32 %v633, %v648
        %v660 = vadd.f32 %v634, %v648
        %v661 = vadd.f32 %v635, %v648
        %v662 = vadd.f32 %v636, %v648
        %v663 = vadd.f32 %v637, %v648
        %v664 = vadd.f32 %v638, %v648
        %v665 = vadd.f32 %v639, %v648
        %v666 = vadd.f32 %v640, %v648
        %v667 = vadd.f32 %v641, %v648
        %v668 = vadd.f32 %v642, %v648
        %v669 = vadd.f32 %v643, %v648
        %v670 = vadd.f32 %v644, %v648
        %v671 = vadd.f32 %v645, %v648
        %v672 = vadd.f32 %v646, %v648
        %s673 = sld [smem:[#allocation2 + $0x3]]
        %v674 = vstv %s673
        %v675 = vmul.f32 %v674, %v547
        %v676 = vmul.f32 %v674, %v548
        %v677 = vmul.f32 %v674, %v549
        %v678 = vmul.f32 %v674, %v550
        %v679 = vmul.f32 %v674, %v551
        %v680 = vmul.f32 %v674, %v552
        %v681 = vmul.f32 %v674, %v553
        %v682 = vmul.f32 %v674, %v554
        %v683 = vmul.f32 %v674, %v555
        %v684 = vmul.f32 %v674, %v556
        %v685 = vmul.f32 %v674, %v557
        %v686 = vmul.f32 %v674, %v558
        %v687 = vmul.f32 %v674, %v559
        %v688 = vmul.f32 %v674, %v560
        %v689 = vmul.f32 %v674, %v561
        %v690 = vmul.f32 %v674, %v562
        %v691 = vmul.f32 %v674, %v563
        %v692 = vmul.f32 %v674, %v564
        %v693 = vmul.f32 %v674, %v565
        %v694 = vmul.f32 %v674, %v566
        %v695 = vmul.f32 %v674, %v567
        %v696 = vmul.f32 %v674, %v568
        %v697 = vmul.f32 %v674, %v569
        %v698 = vmul.f32 %v674, %v570
        %s699 = sld [smem:[#allocation2 + $0x4]]
        %v700 = vstv %s699
        %v701 = vmul.f32 %v700, %v499
        %v702 = vmul.f32 %v700, %v500
        %v703 = vmul.f32 %v700, %v501
        %v704 = vmul.f32 %v700, %v502
        %v705 = vmul.f32 %v700, %v503
        %v706 = vmul.f32 %v700, %v504
        %v707 = vmul.f32 %v700, %v505
        %v708 = vmul.f32 %v700, %v506
        %v709 = vmul.f32 %v700, %v507
        %v710 = vmul.f32 %v700, %v508
        %v711 = vmul.f32 %v700, %v509
        %v712 = vmul.f32 %v700, %v510
        %v713 = vmul.f32 %v700, %v511
        %v714 = vmul.f32 %v700, %v512
        %v715 = vmul.f32 %v700, %v513
        %v716 = vmul.f32 %v700, %v514
        %v717 = vmul.f32 %v700, %v515
        %v718 = vmul.f32 %v700, %v516
        %v719 = vmul.f32 %v700, %v517
        %v720 = vmul.f32 %v700, %v518
        %v721 = vmul.f32 %v700, %v519
        %v722 = vmul.f32 %v700, %v520
        %v723 = vmul.f32 %v700, %v521
        %v724 = vmul.f32 %v700, %v522
        %v725 = vadd.f32 %v675, %v701
        %v726 = vadd.f32 %v676, %v702
        %v727 = vadd.f32 %v677, %v703
        %v728 = vadd.f32 %v678, %v704
        %v729 = vadd.f32 %v679, %v705
        %v730 = vadd.f32 %v680, %v706
        %v731 = vadd.f32 %v681, %v707
        %v732 = vadd.f32 %v682, %v708
        %v733 = vadd.f32 %v683, %v709
        %v734 = vadd.f32 %v684, %v710
        %v735 = vadd.f32 %v685, %v711
        %v736 = vadd.f32 %v686, %v712
        %v737 = vadd.f32 %v687, %v713
        %v738 = vadd.f32 %v688, %v714
        %v739 = vadd.f32 %v689, %v715
        %v740 = vadd.f32 %v690, %v716
        %v741 = vadd.f32 %v691, %v717
        %v742 = vadd.f32 %v692, %v718
        %v743 = vadd.f32 %v693, %v719
        %v744 = vadd.f32 %v694, %v720
        %v745 = vadd.f32 %v695, %v721
        %v746 = vadd.f32 %v696, %v722
        %v747 = vadd.f32 %v697, %v723
        %v748 = vadd.f32 %v698, %v724
        %s749 = sld [smem:[#allocation2 + $0x5]]
        %v750 = vstv %s749
        %v751 = vadd.f32 %v725, %v750
        %v752 = vadd.f32 %v726, %v750
        %v753 = vadd.f32 %v727, %v750
        %v754 = vadd.f32 %v728, %v750
        %v755 = vadd.f32 %v729, %v750
        %v756 = vadd.f32 %v730, %v750
        %v757 = vadd.f32 %v731, %v750
        %v758 = vadd.f32 %v732, %v750
        %v759 = vadd.f32 %v733, %v750
        %v760 = vadd.f32 %v734, %v750
        %v761 = vadd.f32 %v735, %v750
        %v762 = vadd.f32 %v736, %v750
        %v763 = vadd.f32 %v737, %v750
        %v764 = vadd.f32 %v738, %v750
        %v765 = vadd.f32 %v739, %v750
        %v766 = vadd.f32 %v740, %v750
        %v767 = vadd.f32 %v741, %v750
        %v768 = vadd.f32 %v742, %v750
        %v769 = vadd.f32 %v743, %v750
        %v770 = vadd.f32 %v744, %v750
        %v771 = vadd.f32 %v745, %v750
        %v772 = vadd.f32 %v746, %v750
        %v773 = vadd.f32 %v747, %v750
        %v774 = vadd.f32 %v748, %v750
        %s775 = sld [smem:[#allocation2 + $0x6]]
        %v776 = vstv %s775
        %v777 = vmul.f32 %v776, %v547
        %v778 = vmul.f32 %v776, %v548
        %v779 = vmul.f32 %v776, %v549
        %v780 = vmul.f32 %v776, %v550
        %v781 = vmul.f32 %v776, %v551
        %v782 = vmul.f32 %v776, %v552
        %v783 = vmul.f32 %v776, %v553
        %v784 = vmul.f32 %v776, %v554
        %v785 = vmul.f32 %v776, %v555
        %v786 = vmul.f32 %v776, %v556
        %v787 = vmul.f32 %v776, %v557
        %v788 = vmul.f32 %v776, %v558
        %v789 = vmul.f32 %v776, %v559
        %v790 = vmul.f32 %v776, %v560
        %v791 = vmul.f32 %v776, %v561
        %v792 = vmul.f32 %v776, %v562
        %v793 = vmul.f32 %v776, %v563
        %v794 = vmul.f32 %v776, %v564
        %v795 = vmul.f32 %v776, %v565
        %v796 = vmul.f32 %v776, %v566
        %v797 = vmul.f32 %v776, %v567
        %v798 = vmul.f32 %v776, %v568
        %v799 = vmul.f32 %v776, %v569
        %v800 = vmul.f32 %v776, %v570
        %s801 = sld [smem:[#allocation2 + $0x7]]
        %v802 = vstv %s801
        %v803 = vmul.f32 %v802, %v499
        %v804 = vmul.f32 %v802, %v500
        %v805 = vmul.f32 %v802, %v501
        %v806 = vmul.f32 %v802, %v502
        %v807 = vmul.f32 %v802, %v503
        %v808 = vmul.f32 %v802, %v504
        %v809 = vmul.f32 %v802, %v505
        %v810 = vmul.f32 %v802, %v506
        %v811 = vmul.f32 %v802, %v507
        %v812 = vmul.f32 %v802, %v508
        %v813 = vmul.f32 %v802, %v509
        %v814 = vmul.f32 %v802, %v510
        %v815 = vmul.f32 %v802, %v511
        %v816 = vmul.f32 %v802, %v512
        %v817 = vmul.f32 %v802, %v513
        %v818 = vmul.f32 %v802, %v514
        %v819 = vmul.f32 %v802, %v515
        %v820 = vmul.f32 %v802, %v516
        %v821 = vmul.f32 %v802, %v517
        %v822 = vmul.f32 %v802, %v518
        %v823 = vmul.f32 %v802, %v519
        %v824 = vmul.f32 %v802, %v520
        %v825 = vmul.f32 %v802, %v521
        %v826 = vmul.f32 %v802, %v522
        %v827 = vadd.f32 %v777, %v803
        %v828 = vadd.f32 %v778, %v804
        %v829 = vadd.f32 %v779, %v805
        %v830 = vadd.f32 %v780, %v806
        %v831 = vadd.f32 %v781, %v807
        %v832 = vadd.f32 %v782, %v808
        %v833 = vadd.f32 %v783, %v809
        %v834 = vadd.f32 %v784, %v810
        %v835 = vadd.f32 %v785, %v811
        %v836 = vadd.f32 %v786, %v812
        %v837 = vadd.f32 %v787, %v813
        %v838 = vadd.f32 %v788, %v814
        %v839 = vadd.f32 %v789, %v815
        %v840 = vadd.f32 %v790, %v816
        %v841 = vadd.f32 %v791, %v817
        %v842 = vadd.f32 %v792, %v818
        %v843 = vadd.f32 %v793, %v819
        %v844 = vadd.f32 %v794, %v820
        %v845 = vadd.f32 %v795, %v821
        %v846 = vadd.f32 %v796, %v822
        %v847 = vadd.f32 %v797, %v823
        %v848 = vadd.f32 %v798, %v824
        %v849 = vadd.f32 %v799, %v825
        %v850 = vadd.f32 %v800, %v826
        %s851 = sld [smem:[#allocation2 + $0x8]]
        %v852 = vstv %s851
        %v853 = vadd.f32 %v827, %v852
        %v854 = vadd.f32 %v828, %v852
        %v855 = vadd.f32 %v829, %v852
        %v856 = vadd.f32 %v830, %v852
        %v857 = vadd.f32 %v831, %v852
        %v858 = vadd.f32 %v832, %v852
        %v859 = vadd.f32 %v833, %v852
        %v860 = vadd.f32 %v834, %v852
        %v861 = vadd.f32 %v835, %v852
        %v862 = vadd.f32 %v836, %v852
        %v863 = vadd.f32 %v837, %v852
        %v864 = vadd.f32 %v838, %v852
        %v865 = vadd.f32 %v839, %v852
        %v866 = vadd.f32 %v840, %v852
        %v867 = vadd.f32 %v841, %v852
        %v868 = vadd.f32 %v842, %v852
        %v869 = vadd.f32 %v843, %v852
        %v870 = vadd.f32 %v844, %v852
        %v871 = vadd.f32 %v845, %v852
        %v872 = vadd.f32 %v846, %v852
        %v873 = vadd.f32 %v847, %v852
        %v874 = vadd.f32 %v848, %v852
        %v875 = vadd.f32 %v849, %v852
        %v876 = vadd.f32 %v850, %v852
        %v877 = vmul.f32 %v649, %v649
        %v878 = vmul.f32 %v650, %v650
        %v879 = vmul.f32 %v651, %v651
        %v880 = vmul.f32 %v652, %v652
        %v881 = vmul.f32 %v653, %v653
        %v882 = vmul.f32 %v654, %v654
        %v883 = vmul.f32 %v655, %v655
        %v884 = vmul.f32 %v656, %v656
        %v885 = vmul.f32 %v657, %v657
        %v886 = vmul.f32 %v658, %v658
        %v887 = vmul.f32 %v659, %v659
        %v888 = vmul.f32 %v660, %v660
        %v889 = vmul.f32 %v661, %v661
        %v890 = vmul.f32 %v662, %v662
        %v891 = vmul.f32 %v663, %v663
        %v892 = vmul.f32 %v664, %v664
        %v893 = vmul.f32 %v665, %v665
        %v894 = vmul.f32 %v666, %v666
        %v895 = vmul.f32 %v667, %v667
        %v896 = vmul.f32 %v668, %v668
        %v897 = vmul.f32 %v669, %v669
        %v898 = vmul.f32 %v670, %v670
        %v899 = vmul.f32 %v671, %v671
        %v900 = vmul.f32 %v672, %v672
        %v901 = vmul.f32 %v751, %v751
        %v902 = vmul.f32 %v752, %v752
        %v903 = vmul.f32 %v753, %v753
        %v904 = vmul.f32 %v754, %v754
        %v905 = vmul.f32 %v755, %v755
        %v906 = vmul.f32 %v756, %v756
        %v907 = vmul.f32 %v757, %v757
        %v908 = vmul.f32 %v758, %v758
        %v909 = vmul.f32 %v759, %v759
        %v910 = vmul.f32 %v760, %v760
        %v911 = vmul.f32 %v761, %v761
        %v912 = vmul.f32 %v762, %v762
        %v913 = vmul.f32 %v763, %v763
        %v914 = vmul.f32 %v764, %v764
        %v915 = vmul.f32 %v765, %v765
        %v916 = vmul.f32 %v766, %v766
        %v917 = vmul.f32 %v767, %v767
        %v918 = vmul.f32 %v768, %v768
        %v919 = vmul.f32 %v769, %v769
        %v920 = vmul.f32 %v770, %v770
        %v921 = vmul.f32 %v771, %v771
        %v922 = vmul.f32 %v772, %v772
        %v923 = vmul.f32 %v773, %v773
        %v924 = vmul.f32 %v774, %v774
        %v925 = vadd.f32 %v877, %v901
        %v926 = vadd.f32 %v878, %v902
        %v927 = vadd.f32 %v879, %v903
        %v928 = vadd.f32 %v880, %v904
        %v929 = vadd.f32 %v881, %v905
        %v930 = vadd.f32 %v882, %v906
        %v931 = vadd.f32 %v883, %v907
        %v932 = vadd.f32 %v884, %v908
        %v933 = vadd.f32 %v885, %v909
        %v934 = vadd.f32 %v886, %v910
        %v935 = vadd.f32 %v887, %v911
        %v936 = vadd.f32 %v888, %v912
        %v937 = vadd.f32 %v889, %v913
        %v938 = vadd.f32 %v890, %v914
        %v939 = vadd.f32 %v891, %v915
        %v940 = vadd.f32 %v892, %v916
        %v941 = vadd.f32 %v893, %v917
        %v942 = vadd.f32 %v894, %v918
        %v943 = vadd.f32 %v895, %v919
        %v944 = vadd.f32 %v896, %v920
        %v945 = vadd.f32 %v897, %v921
        %v946 = vadd.f32 %v898, %v922
        %v947 = vadd.f32 %v899, %v923
        %v948 = vadd.f32 %v900, %v924
        %v949 = vmul.f32 %v853, %v853
        %v950 = vmul.f32 %v854, %v854
        %v951 = vmul.f32 %v855, %v855
        %v952 = vmul.f32 %v856, %v856
        %v953 = vmul.f32 %v857, %v857
        %v954 = vmul.f32 %v858, %v858
        %v955 = vmul.f32 %v859, %v859
        %v956 = vmul.f32 %v860, %v860
        %v957 = vmul.f32 %v861, %v861
        %v958 = vmul.f32 %v862, %v862
        %v959 = vmul.f32 %v863, %v863
        %v960 = vmul.f32 %v864, %v864
        %v961 = vmul.f32 %v865, %v865
        %v962 = vmul.f32 %v866, %v866
        %v963 = vmul.f32 %v867, %v867
        %v964 = vmul.f32 %v868, %v868
        %v965 = vmul.f32 %v869, %v869
        %v966 = vmul.f32 %v870, %v870
        %v967 = vmul.f32 %v871, %v871
        %v968 = vmul.f32 %v872, %v872
        %v969 = vmul.f32 %v873, %v873
        %v970 = vmul.f32 %v874, %v874
        %v971 = vmul.f32 %v875, %v875
        %v972 = vmul.f32 %v876, %v876
        %v973 = vadd.f32 %v925, %v949
        %v974 = vadd.f32 %v926, %v950
        %v975 = vadd.f32 %v927, %v951
        %v976 = vadd.f32 %v928, %v952
        %v977 = vadd.f32 %v929, %v953
        %v978 = vadd.f32 %v930, %v954
        %v979 = vadd.f32 %v931, %v955
        %v980 = vadd.f32 %v932, %v956
        %v981 = vadd.f32 %v933, %v957
        %v982 = vadd.f32 %v934, %v958
        %v983 = vadd.f32 %v935, %v959
        %v984 = vadd.f32 %v936, %v960
        %v985 = vadd.f32 %v937, %v961
        %v986 = vadd.f32 %v938, %v962
        %v987 = vadd.f32 %v939, %v963
        %v988 = vadd.f32 %v940, %v964
        %v989 = vadd.f32 %v941, %v965
        %v990 = vadd.f32 %v942, %v966
        %v991 = vadd.f32 %v943, %v967
        %v992 = vadd.f32 %v944, %v968
        %v993 = vadd.f32 %v945, %v969
        %v994 = vadd.f32 %v946, %v970
        %v995 = vadd.f32 %v947, %v971
        %v996 = vadd.f32 %v948, %v972
        %v997 = vmax.f32 %v973, 1e-24
        %v998 = vmax.f32 %v974, 1e-24
        %v999 = vmax.f32 %v975, 1e-24
        %v1000 = vmax.f32 %v976, 1e-24
        %v1001 = vmax.f32 %v977, 1e-24
        %v1002 = vmax.f32 %v978, 1e-24
        %v1003 = vmax.f32 %v979, 1e-24
        %v1004 = vmax.f32 %v980, 1e-24
        %v1005 = vmax.f32 %v981, 1e-24
        %v1006 = vmax.f32 %v982, 1e-24
        %v1007 = vmax.f32 %v983, 1e-24
        %v1008 = vmax.f32 %v984, 1e-24
        %v1009 = vmax.f32 %v985, 1e-24
        %v1010 = vmax.f32 %v986, 1e-24
        %v1011 = vmax.f32 %v987, 1e-24
        %v1012 = vmax.f32 %v988, 1e-24
        %v1013 = vmax.f32 %v989, 1e-24
        %v1014 = vmax.f32 %v990, 1e-24
        %v1015 = vmax.f32 %v991, 1e-24
        %v1016 = vmax.f32 %v992, 1e-24
        %v1017 = vmax.f32 %v993, 1e-24
        %v1018 = vmax.f32 %v994, 1e-24
        %v1019 = vmax.f32 %v995, 1e-24
        %v1020 = vmax.f32 %v996, 1e-24
        %v1021 = vrsqrt.pop %v997
        %v1022 = vmul.f32 %v1021, %v997
        %v1023 = vmul.f32 %v1022, %v1021
        %v1024 = vmul.f32 0.5, %v1023
        %v1025 = vsub.f32 1.5, %v1024
        %v1026 = vmul.f32 %v1021, %v1025
        %vm1027 = vweird.f32 %v997
        %vm1028 = vweird.f32 %v1021
        %vm1029 = vmor %vm1027, %vm1028
        %v1030 = vsel %vm1029, %v1021, %v1026
        %v1031 = vrsqrt.pop %v998
        %v1032 = vmul.f32 %v1031, %v998
        %v1033 = vmul.f32 %v1032, %v1031
        %v1034 = vmul.f32 0.5, %v1033
        %v1035 = vsub.f32 1.5, %v1034
        %v1036 = vmul.f32 %v1031, %v1035
        %vm1037 = vweird.f32 %v998
        %vm1038 = vweird.f32 %v1031
        %vm1039 = vmor %vm1037, %vm1038
        %v1040 = vsel %vm1039, %v1031, %v1036
        %v1041 = vrsqrt.pop %v999
        %v1042 = vmul.f32 %v1041, %v999
        %v1043 = vmul.f32 %v1042, %v1041
        %v1044 = vmul.f32 0.5, %v1043
        %v1045 = vsub.f32 1.5, %v1044
        %v1046 = vmul.f32 %v1041, %v1045
        %vm1047 = vweird.f32 %v999
        %vm1048 = vweird.f32 %v1041
        %vm1049 = vmor %vm1047, %vm1048
        %v1050 = vsel %vm1049, %v1041, %v1046
        %v1051 = vrsqrt.pop %v1000
        %v1052 = vmul.f32 %v1051, %v1000
        %v1053 = vmul.f32 %v1052, %v1051
        %v1054 = vmul.f32 0.5, %v1053
        %v1055 = vsub.f32 1.5, %v1054
        %v1056 = vmul.f32 %v1051, %v1055
        %vm1057 = vweird.f32 %v1000
        %vm1058 = vweird.f32 %v1051
        %vm1059 = vmor %vm1057, %vm1058
        %v1060 = vsel %vm1059, %v1051, %v1056
        %v1061 = vrsqrt.pop %v1001
        %v1062 = vmul.f32 %v1061, %v1001
        %v1063 = vmul.f32 %v1062, %v1061
        %v1064 = vmul.f32 0.5, %v1063
        %v1065 = vsub.f32 1.5, %v1064
        %v1066 = vmul.f32 %v1061, %v1065
        %vm1067 = vweird.f32 %v1001
        %vm1068 = vweird.f32 %v1061
        %vm1069 = vmor %vm1067, %vm1068
        %v1070 = vsel %vm1069, %v1061, %v1066
        %v1071 = vrsqrt.pop %v1002
        %v1072 = vmul.f32 %v1071, %v1002
        %v1073 = vmul.f32 %v1072, %v1071
        %v1074 = vmul.f32 0.5, %v1073
        %v1075 = vsub.f32 1.5, %v1074
        %v1076 = vmul.f32 %v1071, %v1075
        %vm1077 = vweird.f32 %v1002
        %vm1078 = vweird.f32 %v1071
        %vm1079 = vmor %vm1077, %vm1078
        %v1080 = vsel %vm1079, %v1071, %v1076
        %v1081 = vrsqrt.pop %v1003
        %v1082 = vmul.f32 %v1081, %v1003
        %v1083 = vmul.f32 %v1082, %v1081
        %v1084 = vmul.f32 0.5, %v1083
        %v1085 = vsub.f32 1.5, %v1084
        %v1086 = vmul.f32 %v1081, %v1085
        %vm1087 = vweird.f32 %v1003
        %vm1088 = vweird.f32 %v1081
        %vm1089 = vmor %vm1087, %vm1088
        %v1090 = vsel %vm1089, %v1081, %v1086
        %v1091 = vrsqrt.pop %v1004
        %v1092 = vmul.f32 %v1091, %v1004
        %v1093 = vmul.f32 %v1092, %v1091
        %v1094 = vmul.f32 0.5, %v1093
        %v1095 = vsub.f32 1.5, %v1094
        %v1096 = vmul.f32 %v1091, %v1095
        %vm1097 = vweird.f32 %v1004
        %vm1098 = vweird.f32 %v1091
        %vm1099 = vmor %vm1097, %vm1098
        %v1100 = vsel %vm1099, %v1091, %v1096
        %v1101 = vrsqrt.pop %v1005
        %v1102 = vmul.f32 %v1101, %v1005
        %v1103 = vmul.f32 %v1102, %v1101
        %v1104 = vmul.f32 0.5, %v1103
        %v1105 = vsub.f32 1.5, %v1104
        %v1106 = vmul.f32 %v1101, %v1105
        %vm1107 = vweird.f32 %v1005
        %vm1108 = vweird.f32 %v1101
        %vm1109 = vmor %vm1107, %vm1108
        %v1110 = vsel %vm1109, %v1101, %v1106
        %v1111 = vrsqrt.pop %v1006
        %v1112 = vmul.f32 %v1111, %v1006
        %v1113 = vmul.f32 %v1112, %v1111
        %v1114 = vmul.f32 0.5, %v1113
        %v1115 = vsub.f32 1.5, %v1114
        %v1116 = vmul.f32 %v1111, %v1115
        %vm1117 = vweird.f32 %v1006
        %vm1118 = vweird.f32 %v1111
        %vm1119 = vmor %vm1117, %vm1118
        %v1120 = vsel %vm1119, %v1111, %v1116
        %v1121 = vrsqrt.pop %v1007
        %v1122 = vmul.f32 %v1121, %v1007
        %v1123 = vmul.f32 %v1122, %v1121
        %v1124 = vmul.f32 0.5, %v1123
        %v1125 = vsub.f32 1.5, %v1124
        %v1126 = vmul.f32 %v1121, %v1125
        %vm1127 = vweird.f32 %v1007
        %vm1128 = vweird.f32 %v1121
        %vm1129 = vmor %vm1127, %vm1128
        %v1130 = vsel %vm1129, %v1121, %v1126
        %v1131 = vrsqrt.pop %v1008
        %v1132 = vmul.f32 %v1131, %v1008
        %v1133 = vmul.f32 %v1132, %v1131
        %v1134 = vmul.f32 0.5, %v1133
        %v1135 = vsub.f32 1.5, %v1134
        %v1136 = vmul.f32 %v1131, %v1135
        %vm1137 = vweird.f32 %v1008
        %vm1138 = vweird.f32 %v1131
        %vm1139 = vmor %vm1137, %vm1138
        %v1140 = vsel %vm1139, %v1131, %v1136
        %v1141 = vrsqrt.pop %v1009
        %v1142 = vmul.f32 %v1141, %v1009
        %v1143 = vmul.f32 %v1142, %v1141
        %v1144 = vmul.f32 0.5, %v1143
        %v1145 = vsub.f32 1.5, %v1144
        %v1146 = vmul.f32 %v1141, %v1145
        %vm1147 = vweird.f32 %v1009
        %vm1148 = vweird.f32 %v1141
        %vm1149 = vmor %vm1147, %vm1148
        %v1150 = vsel %vm1149, %v1141, %v1146
        %v1151 = vrsqrt.pop %v1010
        %v1152 = vmul.f32 %v1151, %v1010
        %v1153 = vmul.f32 %v1152, %v1151
        %v1154 = vmul.f32 0.5, %v1153
        %v1155 = vsub.f32 1.5, %v1154
        %v1156 = vmul.f32 %v1151, %v1155
        %vm1157 = vweird.f32 %v1010
        %vm1158 = vweird.f32 %v1151
        %vm1159 = vmor %vm1157, %vm1158
        %v1160 = vsel %vm1159, %v1151, %v1156
        %v1161 = vrsqrt.pop %v1011
        %v1162 = vmul.f32 %v1161, %v1011
        %v1163 = vmul.f32 %v1162, %v1161
        %v1164 = vmul.f32 0.5, %v1163
        %v1165 = vsub.f32 1.5, %v1164
        %v1166 = vmul.f32 %v1161, %v1165
        %vm1167 = vweird.f32 %v1011
        %vm1168 = vweird.f32 %v1161
        %vm1169 = vmor %vm1167, %vm1168
        %v1170 = vsel %vm1169, %v1161, %v1166
        %v1171 = vrsqrt.pop %v1012
        %v1172 = vmul.f32 %v1171, %v1012
        %v1173 = vmul.f32 %v1172, %v1171
        %v1174 = vmul.f32 0.5, %v1173
        %v1175 = vsub.f32 1.5, %v1174
        %v1176 = vmul.f32 %v1171, %v1175
        %vm1177 = vweird.f32 %v1012
        %vm1178 = vweird.f32 %v1171
        %vm1179 = vmor %vm1177, %vm1178
        %v1180 = vsel %vm1179, %v1171, %v1176
        %v1181 = vrsqrt.pop %v1013
        %v1182 = vmul.f32 %v1181, %v1013
        %v1183 = vmul.f32 %v1182, %v1181
        %v1184 = vmul.f32 0.5, %v1183
        %v1185 = vsub.f32 1.5, %v1184
        %v1186 = vmul.f32 %v1181, %v1185
        %vm1187 = vweird.f32 %v1013
        %vm1188 = vweird.f32 %v1181
        %vm1189 = vmor %vm1187, %vm1188
        %v1190 = vsel %vm1189, %v1181, %v1186
        %v1191 = vrsqrt.pop %v1014
        %v1192 = vmul.f32 %v1191, %v1014
        %v1193 = vmul.f32 %v1192, %v1191
        %v1194 = vmul.f32 0.5, %v1193
        %v1195 = vsub.f32 1.5, %v1194
        %v1196 = vmul.f32 %v1191, %v1195
        %vm1197 = vweird.f32 %v1014
        %vm1198 = vweird.f32 %v1191
        %vm1199 = vmor %vm1197, %vm1198
        %v1200 = vsel %vm1199, %v1191, %v1196
        %v1201 = vrsqrt.pop %v1015
        %v1202 = vmul.f32 %v1201, %v1015
        %v1203 = vmul.f32 %v1202, %v1201
        %v1204 = vmul.f32 0.5, %v1203
        %v1205 = vsub.f32 1.5, %v1204
        %v1206 = vmul.f32 %v1201, %v1205
        %vm1207 = vweird.f32 %v1015
        %vm1208 = vweird.f32 %v1201
        %vm1209 = vmor %vm1207, %vm1208
        %v1210 = vsel %vm1209, %v1201, %v1206
        %v1211 = vrsqrt.pop %v1016
        %v1212 = vmul.f32 %v1211, %v1016
        %v1213 = vmul.f32 %v1212, %v1211
        %v1214 = vmul.f32 0.5, %v1213
        %v1215 = vsub.f32 1.5, %v1214
        %v1216 = vmul.f32 %v1211, %v1215
        %vm1217 = vweird.f32 %v1016
        %vm1218 = vweird.f32 %v1211
        %vm1219 = vmor %vm1217, %vm1218
        %v1220 = vsel %vm1219, %v1211, %v1216
        %v1221 = vrsqrt.pop %v1017
        %v1222 = vmul.f32 %v1221, %v1017
        %v1223 = vmul.f32 %v1222, %v1221
        %v1224 = vmul.f32 0.5, %v1223
        %v1225 = vsub.f32 1.5, %v1224
        %v1226 = vmul.f32 %v1221, %v1225
        %vm1227 = vweird.f32 %v1017
        %vm1228 = vweird.f32 %v1221
        %vm1229 = vmor %vm1227, %vm1228
        %v1230 = vsel %vm1229, %v1221, %v1226
        %v1231 = vrsqrt.pop %v1018
        %v1232 = vmul.f32 %v1231, %v1018
        %v1233 = vmul.f32 %v1232, %v1231
        %v1234 = vmul.f32 0.5, %v1233
        %v1235 = vsub.f32 1.5, %v1234
        %v1236 = vmul.f32 %v1231, %v1235
        %vm1237 = vweird.f32 %v1018
        %vm1238 = vweird.f32 %v1231
        %vm1239 = vmor %vm1237, %vm1238
        %v1240 = vsel %vm1239, %v1231, %v1236
        %v1241 = vrsqrt.pop %v1019
        %v1242 = vmul.f32 %v1241, %v1019
        %v1243 = vmul.f32 %v1242, %v1241
        %v1244 = vmul.f32 0.5, %v1243
        %v1245 = vsub.f32 1.5, %v1244
        %v1246 = vmul.f32 %v1241, %v1245
        %vm1247 = vweird.f32 %v1019
        %vm1248 = vweird.f32 %v1241
        %vm1249 = vmor %vm1247, %vm1248
        %v1250 = vsel %vm1249, %v1241, %v1246
        %v1251 = vrsqrt.pop %v1020
        %v1252 = vmul.f32 %v1251, %v1020
        %v1253 = vmul.f32 %v1252, %v1251
        %v1254 = vmul.f32 0.5, %v1253
        %v1255 = vsub.f32 1.5, %v1254
        %v1256 = vmul.f32 %v1251, %v1255
        %vm1257 = vweird.f32 %v1020
        %vm1258 = vweird.f32 %v1251
        %vm1259 = vmor %vm1257, %vm1258
        %v1260 = vsel %vm1259, %v1251, %v1256
        %v1261 = vmul.f32 %v649, %v1030
        %v1262 = vmul.f32 %v650, %v1040
        %v1263 = vmul.f32 %v651, %v1050
        %v1264 = vmul.f32 %v652, %v1060
        %v1265 = vmul.f32 %v653, %v1070
        %v1266 = vmul.f32 %v654, %v1080
        %v1267 = vmul.f32 %v655, %v1090
        %v1268 = vmul.f32 %v656, %v1100
        %v1269 = vmul.f32 %v657, %v1110
        %v1270 = vmul.f32 %v658, %v1120
        %v1271 = vmul.f32 %v659, %v1130
        %v1272 = vmul.f32 %v660, %v1140
        %v1273 = vmul.f32 %v661, %v1150
        %v1274 = vmul.f32 %v662, %v1160
        %v1275 = vmul.f32 %v663, %v1170
        %v1276 = vmul.f32 %v664, %v1180
        %v1277 = vmul.f32 %v665, %v1190
        %v1278 = vmul.f32 %v666, %v1200
        %v1279 = vmul.f32 %v667, %v1210
        %v1280 = vmul.f32 %v668, %v1220
        %v1281 = vmul.f32 %v669, %v1230
        %v1282 = vmul.f32 %v670, %v1240
        %v1283 = vmul.f32 %v671, %v1250
        %v1284 = vmul.f32 %v672, %v1260
        %1285 = vst [vmem:[%s104] sm:$0xff] %v1261
        %1286 = vst [vmem:[%s104 + $0x8] sm:$0xff] %v1262
        %1287 = vst [vmem:[%s104 + $0x10] sm:$0xff] %v1263
        %1288 = vst [vmem:[%s104 + $0x18] sm:$0xff] %v1264
        %1289 = vst [vmem:[%s104 + $0x20] sm:$0xff] %v1265
        %1290 = vst [vmem:[%s104 + $0x28] sm:$0xff] %v1266
        %1291 = vst [vmem:[%s104 + $0x30] sm:$0xff] %v1267
        %1292 = vst [vmem:[%s104 + $0x38] sm:$0xff] %v1268
        %1293 = vst [vmem:[%s104 + $0x40] sm:$0xff] %v1269
        %1294 = vst [vmem:[%s104 + $0x48] sm:$0xff] %v1270
        %1295 = vst [vmem:[%s104 + $0x50] sm:$0xff] %v1271
        %1296 = vst [vmem:[%s104 + $0x58] sm:$0xff] %v1272
        %1297 = vst [vmem:[%s104 + $0x60] sm:$0xff] %v1273
        %1298 = vst [vmem:[%s104 + $0x68] sm:$0xff] %v1274
        %1299 = vst [vmem:[%s104 + $0x70] sm:$0xff] %v1275
        %1300 = vst [vmem:[%s104 + $0x78] sm:$0xff] %v1276
        %1301 = vst [vmem:[%s104 + $0x80] sm:$0xff] %v1277
        %1302 = vst [vmem:[%s104 + $0x88] sm:$0xff] %v1278
        %1303 = vst [vmem:[%s104 + $0x90] sm:$0xff] %v1279
        %1304 = vst [vmem:[%s104 + $0x98] sm:$0xff] %v1280
        %1305 = vst [vmem:[%s104 + $0xa0] sm:$0xff] %v1281
        %1306 = vst [vmem:[%s104 + $0xa8] sm:$0xff] %v1282
        %1307 = vst [vmem:[%s104 + $0xb0] sm:$0xff] %v1283
        %1308 = vst [vmem:[%s104 + $0xb8] sm:$0xff] %v1284
        %v1309 = vmul.f32 %v751, %v1030
        %v1310 = vmul.f32 %v752, %v1040
        %v1311 = vmul.f32 %v753, %v1050
        %v1312 = vmul.f32 %v754, %v1060
        %v1313 = vmul.f32 %v755, %v1070
        %v1314 = vmul.f32 %v756, %v1080
        %v1315 = vmul.f32 %v757, %v1090
        %v1316 = vmul.f32 %v758, %v1100
        %v1317 = vmul.f32 %v759, %v1110
        %v1318 = vmul.f32 %v760, %v1120
        %v1319 = vmul.f32 %v761, %v1130
        %v1320 = vmul.f32 %v762, %v1140
        %v1321 = vmul.f32 %v763, %v1150
        %v1322 = vmul.f32 %v764, %v1160
        %v1323 = vmul.f32 %v765, %v1170
        %v1324 = vmul.f32 %v766, %v1180
        %v1325 = vmul.f32 %v767, %v1190
        %v1326 = vmul.f32 %v768, %v1200
        %v1327 = vmul.f32 %v769, %v1210
        %v1328 = vmul.f32 %v770, %v1220
        %v1329 = vmul.f32 %v771, %v1230
        %v1330 = vmul.f32 %v772, %v1240
        %v1331 = vmul.f32 %v773, %v1250
        %v1332 = vmul.f32 %v774, %v1260
        %s1333 = scalar_lea.vmem %s104, 192 [#allocation4]
        %1334 = vst [vmem:[%s1333] sm:$0xff] %v1309
        %1335 = vst [vmem:[%s1333 + $0x8] sm:$0xff] %v1310
        %1336 = vst [vmem:[%s1333 + $0x10] sm:$0xff] %v1311
        %1337 = vst [vmem:[%s1333 + $0x18] sm:$0xff] %v1312
        %1338 = vst [vmem:[%s1333 + $0x20] sm:$0xff] %v1313
        %1339 = vst [vmem:[%s1333 + $0x28] sm:$0xff] %v1314
        %1340 = vst [vmem:[%s1333 + $0x30] sm:$0xff] %v1315
        %1341 = vst [vmem:[%s1333 + $0x38] sm:$0xff] %v1316
        %1342 = vst [vmem:[%s1333 + $0x40] sm:$0xff] %v1317
        %1343 = vst [vmem:[%s1333 + $0x48] sm:$0xff] %v1318
        %1344 = vst [vmem:[%s1333 + $0x50] sm:$0xff] %v1319
        %1345 = vst [vmem:[%s1333 + $0x58] sm:$0xff] %v1320
        %1346 = vst [vmem:[%s1333 + $0x60] sm:$0xff] %v1321
        %1347 = vst [vmem:[%s1333 + $0x68] sm:$0xff] %v1322
        %1348 = vst [vmem:[%s1333 + $0x70] sm:$0xff] %v1323
        %1349 = vst [vmem:[%s1333 + $0x78] sm:$0xff] %v1324
        %1350 = vst [vmem:[%s1333 + $0x80] sm:$0xff] %v1325
        %1351 = vst [vmem:[%s1333 + $0x88] sm:$0xff] %v1326
        %1352 = vst [vmem:[%s1333 + $0x90] sm:$0xff] %v1327
        %1353 = vst [vmem:[%s1333 + $0x98] sm:$0xff] %v1328
        %1354 = vst [vmem:[%s1333 + $0xa0] sm:$0xff] %v1329
        %1355 = vst [vmem:[%s1333 + $0xa8] sm:$0xff] %v1330
        %1356 = vst [vmem:[%s1333 + $0xb0] sm:$0xff] %v1331
        %1357 = vst [vmem:[%s1333 + $0xb8] sm:$0xff] %v1332
        %v1358 = vmul.f32 %v853, %v1030
        %v1359 = vmul.f32 %v854, %v1040
        %v1360 = vmul.f32 %v855, %v1050
        %v1361 = vmul.f32 %v856, %v1060
        %v1362 = vmul.f32 %v857, %v1070
        %v1363 = vmul.f32 %v858, %v1080
        %v1364 = vmul.f32 %v859, %v1090
        %v1365 = vmul.f32 %v860, %v1100
        %v1366 = vmul.f32 %v861, %v1110
        %v1367 = vmul.f32 %v862, %v1120
        %v1368 = vmul.f32 %v863, %v1130
        %v1369 = vmul.f32 %v864, %v1140
        %v1370 = vmul.f32 %v865, %v1150
        %v1371 = vmul.f32 %v866, %v1160
        %v1372 = vmul.f32 %v867, %v1170
        %v1373 = vmul.f32 %v868, %v1180
        %v1374 = vmul.f32 %v869, %v1190
        %v1375 = vmul.f32 %v870, %v1200
        %v1376 = vmul.f32 %v871, %v1210
        %v1377 = vmul.f32 %v872, %v1220
        %v1378 = vmul.f32 %v873, %v1230
        %v1379 = vmul.f32 %v874, %v1240
        %v1380 = vmul.f32 %v875, %v1250
        %v1381 = vmul.f32 %v876, %v1260
        %s1382 = scalar_lea.vmem %s104, 384 [#allocation4]
        %1383 = vst [vmem:[%s1382] sm:$0xff] %v1358
        %1384 = vst [vmem:[%s1382 + $0x8] sm:$0xff] %v1359
        %1385 = vst [vmem:[%s1382 + $0x10] sm:$0xff] %v1360
        %1386 = vst [vmem:[%s1382 + $0x18] sm:$0xff] %v1361
        %1387 = vst [vmem:[%s1382 + $0x20] sm:$0xff] %v1362
        %1388 = vst [vmem:[%s1382 + $0x28] sm:$0xff] %v1363
        %1389 = vst [vmem:[%s1382 + $0x30] sm:$0xff] %v1364
        %1390 = vst [vmem:[%s1382 + $0x38] sm:$0xff] %v1365
        %1391 = vst [vmem:[%s1382 + $0x40] sm:$0xff] %v1366
        %1392 = vst [vmem:[%s1382 + $0x48] sm:$0xff] %v1367
        %1393 = vst [vmem:[%s1382 + $0x50] sm:$0xff] %v1368
        %1394 = vst [vmem:[%s1382 + $0x58] sm:$0xff] %v1369
        %1395 = vst [vmem:[%s1382 + $0x60] sm:$0xff] %v1370
        %1396 = vst [vmem:[%s1382 + $0x68] sm:$0xff] %v1371
        %1397 = vst [vmem:[%s1382 + $0x70] sm:$0xff] %v1372
        %1398 = vst [vmem:[%s1382 + $0x78] sm:$0xff] %v1373
        %1399 = vst [vmem:[%s1382 + $0x80] sm:$0xff] %v1374
        %1400 = vst [vmem:[%s1382 + $0x88] sm:$0xff] %v1375
        %1401 = vst [vmem:[%s1382 + $0x90] sm:$0xff] %v1376
        %1402 = vst [vmem:[%s1382 + $0x98] sm:$0xff] %v1377
        %1403 = vst [vmem:[%s1382 + $0xa0] sm:$0xff] %v1378
        %1404 = vst [vmem:[%s1382 + $0xa8] sm:$0xff] %v1379
        %1405 = vst [vmem:[%s1382 + $0xb0] sm:$0xff] %v1380
        %1406 = vst [vmem:[%s1382 + $0xb8] sm:$0xff] %v1381
        %s1407 = sand.u32 %s42, 1
        %s1408 = sand.u32 %s42, 1
        %s1409 = smul.addr %s1408, 576
        %s1410 = scalar_lea.vmem [#allocation4], %s1409
        // Predicated region
        $region29: #{create_rays_pallas.1} parent=23 // pred_check
          %p1411 = pneg %p52
        $region30: #{create_rays_pallas.1} parent=23 // pred_check_branch
          %1413 = sbr.rel (%p1411) target = $region32
        $region31: #{create_rays_pallas.1} parent=23 // pred_region
          %s1414 = smul.u32 24, %s13
          %s1415 = smul.addr %s1414, 8
          %s1416 = scalar_lea.vmem %s1, %s1415
          // Predicated region
          $region33: #{create_rays_pallas.1} parent=31 // pred_check
            _
          $region34: #{create_rays_pallas.1} parent=31 // pred_check_branch
            %1418 = sbr.rel (0) target = $region36
          $region35: #{create_rays_pallas.1} parent=31 // pred_region
            // Predicated region
            $region37: #{create_rays_pallas.1} parent=35 // pred_check
              _
            $region38: #{create_rays_pallas.1} parent=35 // pred_check_branch
              %1420 = sbr.rel (0) target = $region40
            $region39: #{create_rays_pallas.1} parent=35 // pred_region
              // Predicated region
              $region52: #{create_rays_pallas.1} parent=39 // pred_check
                _
              $region53: #{create_rays_pallas.1} parent=39 // pred_check_branch
                %1578 = sbr.rel (0) target = $region55
              $region54: #{create_rays_pallas.1} parent=39 // pred_region
                loop: start=0, step=1, limit=1
                $region56: #{create_rays_pallas.1} parent=54 // loop_pre_header
                  _
                $region57: #{create_rays_pallas.1} parent=54 // loop_header
                  %s1580 = sphi 0, %s1584
                  %p1581 = scmp.ge.s32.totalorder %s1580, 1
                  %s1585 = sphi %s1410, %s1410
                  %s1586 = sphi %s1416, %s1416
                $region58: #{create_rays_pallas.1} parent=54 // loop_header_branch
                  %1583 = sbr.rel (%p1581) target = $region62
                $region59: #{create_rays_pallas.1} parent=54 // loop_body
                  %v1587 = vld [vmem:[%s1585] sm:$0xff]
                  %1588 = vst [vmem:[%s1586] sm:$0xff] %v1587
                  %v1589 = vld [vmem:[%s1585 + $0x8] sm:$0xff]
                  %1590 = vst [vmem:[%s1586 + $0x8] sm:$0xff] %v1589
                  %v1591 = vld [vmem:[%s1585 + $0x10] sm:$0xff]
                  %1592 = vst [vmem:[%s1586 + $0x10] sm:$0xff] %v1591
                  %v1593 = vld [vmem:[%s1585 + $0x18] sm:$0xff]
                  %1594 = vst [vmem:[%s1586 + $0x18] sm:$0xff] %v1593
                  %v1595 = vld [vmem:[%s1585 + $0x20] sm:$0xff]
                  %1596 = vst [vmem:[%s1586 + $0x20] sm:$0xff] %v1595
                  %v1597 = vld [vmem:[%s1585 + $0x28] sm:$0xff]
                  %1598 = vst [vmem:[%s1586 + $0x28] sm:$0xff] %v1597
                  %v1599 = vld [vmem:[%s1585 + $0x30] sm:$0xff]
                  %1600 = vst [vmem:[%s1586 + $0x30] sm:$0xff] %v1599
                  %v1601 = vld [vmem:[%s1585 + $0x38] sm:$0xff]
                  %1602 = vst [vmem:[%s1586 + $0x38] sm:$0xff] %v1601
                  %v1603 = vld [vmem:[%s1585 + $0x40] sm:$0xff]
                  %1604 = vst [vmem:[%s1586 + $0x40] sm:$0xff] %v1603
                  %v1605 = vld [vmem:[%s1585 + $0x48] sm:$0xff]
                  %1606 = vst [vmem:[%s1586 + $0x48] sm:$0xff] %v1605
                  %v1607 = vld [vmem:[%s1585 + $0x50] sm:$0xff]
                  %1608 = vst [vmem:[%s1586 + $0x50] sm:$0xff] %v1607
                  %v1609 = vld [vmem:[%s1585 + $0x58] sm:$0xff]
                  %1610 = vst [vmem:[%s1586 + $0x58] sm:$0xff] %v1609
                  %v1611 = vld [vmem:[%s1585 + $0x60] sm:$0xff]
                  %1612 = vst [vmem:[%s1586 + $0x60] sm:$0xff] %v1611
                  %v1613 = vld [vmem:[%s1585 + $0x68] sm:$0xff]
                  %1614 = vst [vmem:[%s1586 + $0x68] sm:$0xff] %v1613
                  %v1615 = vld [vmem:[%s1585 + $0x70] sm:$0xff]
                  %1616 = vst [vmem:[%s1586 + $0x70] sm:$0xff] %v1615
                  %v1617 = vld [vmem:[%s1585 + $0x78] sm:$0xff]
                  %1618 = vst [vmem:[%s1586 + $0x78] sm:$0xff] %v1617
                  %v1619 = vld [vmem:[%s1585 + $0x80] sm:$0xff]
                  %1620 = vst [vmem:[%s1586 + $0x80] sm:$0xff] %v1619
                  %v1621 = vld [vmem:[%s1585 + $0x88] sm:$0xff]
                  %1622 = vst [vmem:[%s1586 + $0x88] sm:$0xff] %v1621
                  %v1623 = vld [vmem:[%s1585 + $0x90] sm:$0xff]
                  %1624 = vst [vmem:[%s1586 + $0x90] sm:$0xff] %v1623
                  %v1625 = vld [vmem:[%s1585 + $0x98] sm:$0xff]
                  %1626 = vst [vmem:[%s1586 + $0x98] sm:$0xff] %v1625
                  %v1627 = vld [vmem:[%s1585 + $0xa0] sm:$0xff]
                  %1628 = vst [vmem:[%s1586 + $0xa0] sm:$0xff] %v1627
                  %v1629 = vld [vmem:[%s1585 + $0xa8] sm:$0xff]
                  %1630 = vst [vmem:[%s1586 + $0xa8] sm:$0xff] %v1629
                  %v1631 = vld [vmem:[%s1585 + $0xb0] sm:$0xff]
                  %1632 = vst [vmem:[%s1586 + $0xb0] sm:$0xff] %v1631
                  %v1633 = vld [vmem:[%s1585 + $0xb8] sm:$0xff]
                  %1634 = vst [vmem:[%s1586 + $0xb8] sm:$0xff] %v1633
                  %v1635 = vld [vmem:[%s1585 + $0xc0] sm:$0xff]
                  %1636 = vst [vmem:[%s1586 + $0x180] sm:$0xff] %v1635
                  %v1637 = vld [vmem:[%s1585 + $0xc8] sm:$0xff]
                  %1638 = vst [vmem:[%s1586 + $0x188] sm:$0xff] %v1637
                  %v1639 = vld [vmem:[%s1585 + $0xd0] sm:$0xff]
                  %1640 = vst [vmem:[%s1586 + $0x190] sm:$0xff] %v1639
                  %v1641 = vld [vmem:[%s1585 + $0xd8] sm:$0xff]
                  %1642 = vst [vmem:[%s1586 + $0x198] sm:$0xff] %v1641
                  %v1643 = vld [vmem:[%s1585 + $0xe0] sm:$0xff]
                  %1644 = vst [vmem:[%s1586 + $0x1a0] sm:$0xff] %v1643
                  %v1645 = vld [vmem:[%s1585 + $0xe8] sm:$0xff]
                  %1646 = vst [vmem:[%s1586 + $0x1a8] sm:$0xff] %v1645
                  %v1647 = vld [vmem:[%s1585 + $0xf0] sm:$0xff]
                  %1648 = vst [vmem:[%s1586 + $0x1b0] sm:$0xff] %v1647
                  %v1649 = vld [vmem:[%s1585 + $0xf8] sm:$0xff]
                  %1650 = vst [vmem:[%s1586 + $0x1b8] sm:$0xff] %v1649
                  %v1651 = vld [vmem:[%s1585 + $0x100] sm:$0xff]
                  %1652 = vst [vmem:[%s1586 + $0x1c0] sm:$0xff] %v1651
                  %v1653 = vld [vmem:[%s1585 + $0x108] sm:$0xff]
                  %1654 = vst [vmem:[%s1586 + $0x1c8] sm:$0xff] %v1653
                  %v1655 = vld [vmem:[%s1585 + $0x110] sm:$0xff]
                  %1656 = vst [vmem:[%s1586 + $0x1d0] sm:$0xff] %v1655
                  %v1657 = vld [vmem:[%s1585 + $0x118] sm:$0xff]
                  %1658 = vst [vmem:[%s1586 + $0x1d8] sm:$0xff] %v1657
                  %v1659 = vld [vmem:[%s1585 + $0x120] sm:$0xff]
                  %1660 = vst [vmem:[%s1586 + $0x1e0] sm:$0xff] %v1659
                  %v1661 = vld [vmem:[%s1585 + $0x128] sm:$0xff]
                  %1662 = vst [vmem:[%s1586 + $0x1e8] sm:$0xff] %v1661
                  %v1663 = vld [vmem:[%s1585 + $0x130] sm:$0xff]
                  %1664 = vst [vmem:[%s1586 + $0x1f0] sm:$0xff] %v1663
                  %v1665 = vld [vmem:[%s1585 + $0x138] sm:$0xff]
                  %1666 = vst [vmem:[%s1586 + $0x1f8] sm:$0xff] %v1665
                  %v1667 = vld [vmem:[%s1585 + $0x140] sm:$0xff]
                  %1668 = vst [vmem:[%s1586 + $0x200] sm:$0xff] %v1667
                  %v1669 = vld [vmem:[%s1585 + $0x148] sm:$0xff]
                  %1670 = vst [vmem:[%s1586 + $0x208] sm:$0xff] %v1669
                  %v1671 = vld [vmem:[%s1585 + $0x150] sm:$0xff]
                  %1672 = vst [vmem:[%s1586 + $0x210] sm:$0xff] %v1671
                  %v1673 = vld [vmem:[%s1585 + $0x158] sm:$0xff]
                  %1674 = vst [vmem:[%s1586 + $0x218] sm:$0xff] %v1673
                  %v1675 = vld [vmem:[%s1585 + $0x160] sm:$0xff]
                  %1676 = vst [vmem:[%s1586 + $0x220] sm:$0xff] %v1675
                  %v1677 = vld [vmem:[%s1585 + $0x168] sm:$0xff]
                  %1678 = vst [vmem:[%s1586 + $0x228] sm:$0xff] %v1677
                  %v1679 = vld [vmem:[%s1585 + $0x170] sm:$0xff]
                  %1680 = vst [vmem:[%s1586 + $0x230] sm:$0xff] %v1679
                  %v1681 = vld [vmem:[%s1585 + $0x178] sm:$0xff]
                  %1682 = vst [vmem:[%s1586 + $0x238] sm:$0xff] %v1681
                  %v1683 = vld [vmem:[%s1585 + $0x180] sm:$0xff]
                  %1684 = vst [vmem:[%s1586 + $0x300] sm:$0xff] %v1683
                  %v1685 = vld [vmem:[%s1585 + $0x188] sm:$0xff]
                  %1686 = vst [vmem:[%s1586 + $0x308] sm:$0xff] %v1685
                  %v1687 = vld [vmem:[%s1585 + $0x190] sm:$0xff]
                  %1688 = vst [vmem:[%s1586 + $0x310] sm:$0xff] %v1687
                  %v1689 = vld [vmem:[%s1585 + $0x198] sm:$0xff]
                  %1690 = vst [vmem:[%s1586 + $0x318] sm:$0xff] %v1689
                  %v1691 = vld [vmem:[%s1585 + $0x1a0] sm:$0xff]
                  %1692 = vst [vmem:[%s1586 + $0x320] sm:$0xff] %v1691
                  %v1693 = vld [vmem:[%s1585 + $0x1a8] sm:$0xff]
                  %1694 = vst [vmem:[%s1586 + $0x328] sm:$0xff] %v1693
                  %v1695 = vld [vmem:[%s1585 + $0x1b0] sm:$0xff]
                  %1696 = vst [vmem:[%s1586 + $0x330] sm:$0xff] %v1695
                  %v1697 = vld [vmem:[%s1585 + $0x1b8] sm:$0xff]
                  %1698 = vst [vmem:[%s1586 + $0x338] sm:$0xff] %v1697
                  %v1699 = vld [vmem:[%s1585 + $0x1c0] sm:$0xff]
                  %1700 = vst [vmem:[%s1586 + $0x340] sm:$0xff] %v1699
                  %v1701 = vld [vmem:[%s1585 + $0x1c8] sm:$0xff]
                  %1702 = vst [vmem:[%s1586 + $0x348] sm:$0xff] %v1701
                  %v1703 = vld [vmem:[%s1585 + $0x1d0] sm:$0xff]
                  %1704 = vst [vmem:[%s1586 + $0x350] sm:$0xff] %v1703
                  %v1705 = vld [vmem:[%s1585 + $0x1d8] sm:$0xff]
                  %1706 = vst [vmem:[%s1586 + $0x358] sm:$0xff] %v1705
                  %v1707 = vld [vmem:[%s1585 + $0x1e0] sm:$0xff]
                  %1708 = vst [vmem:[%s1586 + $0x360] sm:$0xff] %v1707
                  %v1709 = vld [vmem:[%s1585 + $0x1e8] sm:$0xff]
                  %1710 = vst [vmem:[%s1586 + $0x368] sm:$0xff] %v1709
                  %v1711 = vld [vmem:[%s1585 + $0x1f0] sm:$0xff]
                  %1712 = vst [vmem:[%s1586 + $0x370] sm:$0xff] %v1711
                  %v1713 = vld [vmem:[%s1585 + $0x1f8] sm:$0xff]
                  %1714 = vst [vmem:[%s1586 + $0x378] sm:$0xff] %v1713
                  %v1715 = vld [vmem:[%s1585 + $0x200] sm:$0xff]
                  %1716 = vst [vmem:[%s1586 + $0x380] sm:$0xff] %v1715
                  %v1717 = vld [vmem:[%s1585 + $0x208] sm:$0xff]
                  %1718 = vst [vmem:[%s1586 + $0x388] sm:$0xff] %v1717
                  %v1719 = vld [vmem:[%s1585 + $0x210] sm:$0xff]
                  %1720 = vst [vmem:[%s1586 + $0x390] sm:$0xff] %v1719
                  %v1721 = vld [vmem:[%s1585 + $0x218] sm:$0xff]
                  %1722 = vst [vmem:[%s1586 + $0x398] sm:$0xff] %v1721
                  %v1723 = vld [vmem:[%s1585 + $0x220] sm:$0xff]
                  %1724 = vst [vmem:[%s1586 + $0x3a0] sm:$0xff] %v1723
                  %v1725 = vld [vmem:[%s1585 + $0x228] sm:$0xff]
                  %1726 = vst [vmem:[%s1586 + $0x3a8] sm:$0xff] %v1725
                  %v1727 = vld [vmem:[%s1585 + $0x230] sm:$0xff]
                  %1728 = vst [vmem:[%s1586 + $0x3b0] sm:$0xff] %v1727
                  %v1729 = vld [vmem:[%s1585 + $0x238] sm:$0xff]
                  %1730 = vst [vmem:[%s1586 + $0x3b8] sm:$0xff] %v1729
                $region60: #{create_rays_pallas.1} parent=54 // loop_footer
                  %s1584 = sadd.s32 1, %s1580
                $region61: #{create_rays_pallas.1} parent=54 // loop_footer_branch
                  %1579 = sbr.rel target = $region57
                $region62: #{create_rays_pallas.1} parent=54 // loop_exit
                  _
              $region55: #{create_rays_pallas.1} parent=39 // pred_fallthru
                _
              // Predicated region
              $region63: #{create_rays_pallas.1} parent=39 // pred_check
                _
              $region64: #{create_rays_pallas.1} parent=39 // pred_check_branch
                %1732 = sbr.rel target = $region66
              $region65: #{create_rays_pallas.1} parent=39 // pred_region
                _
              $region66: #{create_rays_pallas.1} parent=39 // pred_fallthru
                _
            $region40: #{create_rays_pallas.1} parent=35 // pred_fallthru
              _
            // Predicated region
            $region41: #{create_rays_pallas.1} parent=35 // pred_check
              _
            $region42: #{create_rays_pallas.1} parent=35 // pred_check_branch
              %1422 = sbr.rel target = $region44
            $region43: #{create_rays_pallas.1} parent=35 // pred_region
              %s1424 = ssub.s32 256, 1
              loop: start=0, step=1, limit=1
              $region45: #{create_rays_pallas.1} parent=43 // loop_pre_header
                _
              $region46: #{create_rays_pallas.1} parent=43 // loop_header
                %s1426 = sphi 0, %s1430
                %p1427 = scmp.ge.s32.totalorder %s1426, 1
                %s1431 = sphi %s1410, %s1410
                %s1432 = sphi %s1416, %s1416
              $region47: #{create_rays_pallas.1} parent=43 // loop_header_branch
                %1429 = sbr.rel (%p1427) target = $region51
              $region48: #{create_rays_pallas.1} parent=43 // loop_body
                %v1433 = vld [vmem:[%s1431] sm:%s1424]
                %1434 = vst [vmem:[%s1432] sm:%s1424] %v1433
                %v1435 = vld [vmem:[%s1431 + $0x8] sm:%s1424]
                %1436 = vst [vmem:[%s1432 + $0x8] sm:%s1424] %v1435
                %v1437 = vld [vmem:[%s1431 + $0x10] sm:%s1424]
                %1438 = vst [vmem:[%s1432 + $0x10] sm:%s1424] %v1437
                %v1439 = vld [vmem:[%s1431 + $0x18] sm:%s1424]
                %1440 = vst [vmem:[%s1432 + $0x18] sm:%s1424] %v1439
                %v1441 = vld [vmem:[%s1431 + $0x20] sm:%s1424]
                %1442 = vst [vmem:[%s1432 + $0x20] sm:%s1424] %v1441
                %v1443 = vld [vmem:[%s1431 + $0x28] sm:%s1424]
                %1444 = vst [vmem:[%s1432 + $0x28] sm:%s1424] %v1443
                %v1445 = vld [vmem:[%s1431 + $0x30] sm:%s1424]
                %1446 = vst [vmem:[%s1432 + $0x30] sm:%s1424] %v1445
                %v1447 = vld [vmem:[%s1431 + $0x38] sm:%s1424]
                %1448 = vst [vmem:[%s1432 + $0x38] sm:%s1424] %v1447
                %v1449 = vld [vmem:[%s1431 + $0x40] sm:%s1424]
                %1450 = vst [vmem:[%s1432 + $0x40] sm:%s1424] %v1449
                %v1451 = vld [vmem:[%s1431 + $0x48] sm:%s1424]
                %1452 = vst [vmem:[%s1432 + $0x48] sm:%s1424] %v1451
                %v1453 = vld [vmem:[%s1431 + $0x50] sm:%s1424]
                %1454 = vst [vmem:[%s1432 + $0x50] sm:%s1424] %v1453
                %v1455 = vld [vmem:[%s1431 + $0x58] sm:%s1424]
                %1456 = vst [vmem:[%s1432 + $0x58] sm:%s1424] %v1455
                %v1457 = vld [vmem:[%s1431 + $0x60] sm:%s1424]
                %1458 = vst [vmem:[%s1432 + $0x60] sm:%s1424] %v1457
                %v1459 = vld [vmem:[%s1431 + $0x68] sm:%s1424]
                %1460 = vst [vmem:[%s1432 + $0x68] sm:%s1424] %v1459
                %v1461 = vld [vmem:[%s1431 + $0x70] sm:%s1424]
                %1462 = vst [vmem:[%s1432 + $0x70] sm:%s1424] %v1461
                %v1463 = vld [vmem:[%s1431 + $0x78] sm:%s1424]
                %1464 = vst [vmem:[%s1432 + $0x78] sm:%s1424] %v1463
                %v1465 = vld [vmem:[%s1431 + $0x80] sm:%s1424]
                %1466 = vst [vmem:[%s1432 + $0x80] sm:%s1424] %v1465
                %v1467 = vld [vmem:[%s1431 + $0x88] sm:%s1424]
                %1468 = vst [vmem:[%s1432 + $0x88] sm:%s1424] %v1467
                %v1469 = vld [vmem:[%s1431 + $0x90] sm:%s1424]
                %1470 = vst [vmem:[%s1432 + $0x90] sm:%s1424] %v1469
                %v1471 = vld [vmem:[%s1431 + $0x98] sm:%s1424]
                %1472 = vst [vmem:[%s1432 + $0x98] sm:%s1424] %v1471
                %v1473 = vld [vmem:[%s1431 + $0xa0] sm:%s1424]
                %1474 = vst [vmem:[%s1432 + $0xa0] sm:%s1424] %v1473
                %v1475 = vld [vmem:[%s1431 + $0xa8] sm:%s1424]
                %1476 = vst [vmem:[%s1432 + $0xa8] sm:%s1424] %v1475
                %v1477 = vld [vmem:[%s1431 + $0xb0] sm:%s1424]
                %1478 = vst [vmem:[%s1432 + $0xb0] sm:%s1424] %v1477
                %v1479 = vld [vmem:[%s1431 + $0xb8] sm:%s1424]
                %1480 = vst [vmem:[%s1432 + $0xb8] sm:%s1424] %v1479
                %v1481 = vld [vmem:[%s1431 + $0xc0] sm:%s1424]
                %1482 = vst [vmem:[%s1432 + $0x180] sm:%s1424] %v1481
                %v1483 = vld [vmem:[%s1431 + $0xc8] sm:%s1424]
                %1484 = vst [vmem:[%s1432 + $0x188] sm:%s1424] %v1483
                %v1485 = vld [vmem:[%s1431 + $0xd0] sm:%s1424]
                %1486 = vst [vmem:[%s1432 + $0x190] sm:%s1424] %v1485
                %v1487 = vld [vmem:[%s1431 + $0xd8] sm:%s1424]
                %1488 = vst [vmem:[%s1432 + $0x198] sm:%s1424] %v1487
                %v1489 = vld [vmem:[%s1431 + $0xe0] sm:%s1424]
                %1490 = vst [vmem:[%s1432 + $0x1a0] sm:%s1424] %v1489
                %v1491 = vld [vmem:[%s1431 + $0xe8] sm:%s1424]
                %1492 = vst [vmem:[%s1432 + $0x1a8] sm:%s1424] %v1491
                %v1493 = vld [vmem:[%s1431 + $0xf0] sm:%s1424]
                %1494 = vst [vmem:[%s1432 + $0x1b0] sm:%s1424] %v1493
                %v1495 = vld [vmem:[%s1431 + $0xf8] sm:%s1424]
                %1496 = vst [vmem:[%s1432 + $0x1b8] sm:%s1424] %v1495
                %v1497 = vld [vmem:[%s1431 + $0x100] sm:%s1424]
                %1498 = vst [vmem:[%s1432 + $0x1c0] sm:%s1424] %v1497
                %v1499 = vld [vmem:[%s1431 + $0x108] sm:%s1424]
                %1500 = vst [vmem:[%s1432 + $0x1c8] sm:%s1424] %v1499
                %v1501 = vld [vmem:[%s1431 + $0x110] sm:%s1424]
                %1502 = vst [vmem:[%s1432 + $0x1d0] sm:%s1424] %v1501
                %v1503 = vld [vmem:[%s1431 + $0x118] sm:%s1424]
                %1504 = vst [vmem:[%s1432 + $0x1d8] sm:%s1424] %v1503
                %v1505 = vld [vmem:[%s1431 + $0x120] sm:%s1424]
                %1506 = vst [vmem:[%s1432 + $0x1e0] sm:%s1424] %v1505
                %v1507 = vld [vmem:[%s1431 + $0x128] sm:%s1424]
                %1508 = vst [vmem:[%s1432 + $0x1e8] sm:%s1424] %v1507
                %v1509 = vld [vmem:[%s1431 + $0x130] sm:%s1424]
                %1510 = vst [vmem:[%s1432 + $0x1f0] sm:%s1424] %v1509
                %v1511 = vld [vmem:[%s1431 + $0x138] sm:%s1424]
                %1512 = vst [vmem:[%s1432 + $0x1f8] sm:%s1424] %v1511
                %v1513 = vld [vmem:[%s1431 + $0x140] sm:%s1424]
                %1514 = vst [vmem:[%s1432 + $0x200] sm:%s1424] %v1513
                %v1515 = vld [vmem:[%s1431 + $0x148] sm:%s1424]
                %1516 = vst [vmem:[%s1432 + $0x208] sm:%s1424] %v1515
                %v1517 = vld [vmem:[%s1431 + $0x150] sm:%s1424]
                %1518 = vst [vmem:[%s1432 + $0x210] sm:%s1424] %v1517
                %v1519 = vld [vmem:[%s1431 + $0x158] sm:%s1424]
                %1520 = vst [vmem:[%s1432 + $0x218] sm:%s1424] %v1519
                %v1521 = vld [vmem:[%s1431 + $0x160] sm:%s1424]
                %1522 = vst [vmem:[%s1432 + $0x220] sm:%s1424] %v1521
                %v1523 = vld [vmem:[%s1431 + $0x168] sm:%s1424]
                %1524 = vst [vmem:[%s1432 + $0x228] sm:%s1424] %v1523
                %v1525 = vld [vmem:[%s1431 + $0x170] sm:%s1424]
                %1526 = vst [vmem:[%s1432 + $0x230] sm:%s1424] %v1525
                %v1527 = vld [vmem:[%s1431 + $0x178] sm:%s1424]
                %1528 = vst [vmem:[%s1432 + $0x238] sm:%s1424] %v1527
                %v1529 = vld [vmem:[%s1431 + $0x180] sm:%s1424]
                %1530 = vst [vmem:[%s1432 + $0x300] sm:%s1424] %v1529
                %v1531 = vld [vmem:[%s1431 + $0x188] sm:%s1424]
                %1532 = vst [vmem:[%s1432 + $0x308] sm:%s1424] %v1531
                %v1533 = vld [vmem:[%s1431 + $0x190] sm:%s1424]
                %1534 = vst [vmem:[%s1432 + $0x310] sm:%s1424] %v1533
                %v1535 = vld [vmem:[%s1431 + $0x198] sm:%s1424]
                %1536 = vst [vmem:[%s1432 + $0x318] sm:%s1424] %v1535
                %v1537 = vld [vmem:[%s1431 + $0x1a0] sm:%s1424]
                %1538 = vst [vmem:[%s1432 + $0x320] sm:%s1424] %v1537
                %v1539 = vld [vmem:[%s1431 + $0x1a8] sm:%s1424]
                %1540 = vst [vmem:[%s1432 + $0x328] sm:%s1424] %v1539
                %v1541 = vld [vmem:[%s1431 + $0x1b0] sm:%s1424]
                %1542 = vst [vmem:[%s1432 + $0x330] sm:%s1424] %v1541
                %v1543 = vld [vmem:[%s1431 + $0x1b8] sm:%s1424]
                %1544 = vst [vmem:[%s1432 + $0x338] sm:%s1424] %v1543
                %v1545 = vld [vmem:[%s1431 + $0x1c0] sm:%s1424]
                %1546 = vst [vmem:[%s1432 + $0x340] sm:%s1424] %v1545
                %v1547 = vld [vmem:[%s1431 + $0x1c8] sm:%s1424]
                %1548 = vst [vmem:[%s1432 + $0x348] sm:%s1424] %v1547
                %v1549 = vld [vmem:[%s1431 + $0x1d0] sm:%s1424]
                %1550 = vst [vmem:[%s1432 + $0x350] sm:%s1424] %v1549
                %v1551 = vld [vmem:[%s1431 + $0x1d8] sm:%s1424]
                %1552 = vst [vmem:[%s1432 + $0x358] sm:%s1424] %v1551
                %v1553 = vld [vmem:[%s1431 + $0x1e0] sm:%s1424]
                %1554 = vst [vmem:[%s1432 + $0x360] sm:%s1424] %v1553
                %v1555 = vld [vmem:[%s1431 + $0x1e8] sm:%s1424]
                %1556 = vst [vmem:[%s1432 + $0x368] sm:%s1424] %v1555
                %v1557 = vld [vmem:[%s1431 + $0x1f0] sm:%s1424]
                %1558 = vst [vmem:[%s1432 + $0x370] sm:%s1424] %v1557
                %v1559 = vld [vmem:[%s1431 + $0x1f8] sm:%s1424]
                %1560 = vst [vmem:[%s1432 + $0x378] sm:%s1424] %v1559
                %v1561 = vld [vmem:[%s1431 + $0x200] sm:%s1424]
                %1562 = vst [vmem:[%s1432 + $0x380] sm:%s1424] %v1561
                %v1563 = vld [vmem:[%s1431 + $0x208] sm:%s1424]
                %1564 = vst [vmem:[%s1432 + $0x388] sm:%s1424] %v1563
                %v1565 = vld [vmem:[%s1431 + $0x210] sm:%s1424]
                %1566 = vst [vmem:[%s1432 + $0x390] sm:%s1424] %v1565
                %v1567 = vld [vmem:[%s1431 + $0x218] sm:%s1424]
                %1568 = vst [vmem:[%s1432 + $0x398] sm:%s1424] %v1567
                %v1569 = vld [vmem:[%s1431 + $0x220] sm:%s1424]
                %1570 = vst [vmem:[%s1432 + $0x3a0] sm:%s1424] %v1569
                %v1571 = vld [vmem:[%s1431 + $0x228] sm:%s1424]
                %1572 = vst [vmem:[%s1432 + $0x3a8] sm:%s1424] %v1571
                %v1573 = vld [vmem:[%s1431 + $0x230] sm:%s1424]
                %1574 = vst [vmem:[%s1432 + $0x3b0] sm:%s1424] %v1573
                %v1575 = vld [vmem:[%s1431 + $0x238] sm:%s1424]
                %1576 = vst [vmem:[%s1432 + $0x3b8] sm:%s1424] %v1575
              $region49: #{create_rays_pallas.1} parent=43 // loop_footer
                %s1430 = sadd.s32 1, %s1426
              $region50: #{create_rays_pallas.1} parent=43 // loop_footer_branch
                %1425 = sbr.rel target = $region46
              $region51: #{create_rays_pallas.1} parent=43 // loop_exit
                _
            $region44: #{create_rays_pallas.1} parent=35 // pred_fallthru
              _
          $region36: #{create_rays_pallas.1} parent=31 // pred_fallthru
            _
          %1733 = vnop
        $region32: #{create_rays_pallas.1} parent=23 // pred_fallthru
          _
      $region24: #{create_rays_pallas.1} parent=5 // pred_fallthru
        _
      %p1734 = scmp.le.s32.totalorder 2, %s8
      // Predicated region
      $region67: #{create_rays_pallas.1} parent=5 // pred_check
        %p1735 = pneg %p1734
      $region68: #{create_rays_pallas.1} parent=5 // pred_check_branch
        %1737 = sbr.rel (%p1735) target = $region70
      $region69: #{create_rays_pallas.1} parent=5 // pred_region
        %s1738 = ssub.s32 %s8, 2
        // Predicated region
        $region71: #{create_rays_pallas.1} parent=69 // pred_check
          %p1739 = pneg %p58
        $region72: #{create_rays_pallas.1} parent=69 // pred_check_branch
          %1741 = sbr.rel (%p1739) target = $region74
        $region73: #{create_rays_pallas.1} parent=69 // pred_region
          %s1742 = sand.u32 %s43, 1
          %s1743 = sand.u32 %s43, 1
          %s1744 = smul.addr %s1743, 576
          %s1745 = scalar_lea.vmem [#allocation4], %s1744
        $region74: #{create_rays_pallas.1} parent=69 // pred_fallthru
          _
      $region70: #{create_rays_pallas.1} parent=5 // pred_fallthru
        _
    $region6: #{create_rays_pallas.1} parent=1 // loop_footer
      %s12 = sadd.s32 1, %s8
    $region7: #{create_rays_pallas.1} parent=1 // loop_footer_branch
      %7 = sbr.rel target = $region3
    $region8: #{create_rays_pallas.1} parent=1 // loop_exit
      _
    %1746 = vsyncpa [#allocation3], 1
    %s1747 = scalar_lea.sflag [#allocation3], 1
    %1748 = vsyncpa %s1747, 1

</llo_original>
